<compile_context>
chip_gen: v7x
topology: tpu7x:2x2x1
jax: 0.10.0
libtpu: 0.0.40
codegen_flags: <defaults>
</compile_context>

<pallas_src>
import functools
import math

import jax
import jax.numpy as jnp
from jax import lax
from jax.experimental import pallas as pl
from jax.experimental.pallas import tpu as pltpu


# ----------------------------- Pallas kernel -------------------------------


def mha_fused_kernel(q_ref, k_ref, v_ref, wq_ref, wk_ref, wv_ref,
                     wo_ref, b_ref, o_ref, *, bb, seq, d_model, h, d_k, d_v,
                     scale):
    # q_ref/k_ref/v_ref blocks: (bb, seq, d_model)
    # wq/wk_ref blocks:         (d_model, h*d_k)   (heads packed along lanes)
    # wv_ref block:             (d_model, h*d_v)
    # wo_ref block:             (h*d_v, d_model)   (output Linear, pre-transposed)
    # b_ref block:              (1, d_model)
    # o_ref block:              (bb, seq, d_model) (lane-dense output)

    # Flatten the batch-block into the sublane axis -> one tall projection
    # matmul per Q/K/V instead of bb short ones.
    qf = q_ref[...].reshape(bb * seq, d_model)
    kf = k_ref[...].reshape(bb * seq, d_model)
    vf = v_ref[...].reshape(bb * seq, d_model)

    # Fold the 1/sqrt(d_k) scale into the Q projection (cheaper than scaling
    # the (seq, seq) scores per head).
    qp = jnp.dot(qf, wq_ref[...], preferred_element_type=jnp.float32) * scale
    kp = jnp.dot(kf, wk_ref[...], preferred_element_type=jnp.float32)
    vp = jnp.dot(vf, wv_ref[...], preferred_element_type=jnp.float32)

    # Per-(batch, head) softmax(QK^T)V.  bb and h are small + static ->
    # unrolled Python loop over static slices.  Heads are concatenated back
    # along the last dim in head order, matching torch.chunk(dim=0) +
    # torch.cat(dim=2).
    rows = []
    for b in range(bb):
        qb = qp[b * seq:(b + 1) * seq, :]
        kb = kp[b * seq:(b + 1) * seq, :]
        vb = vp[b * seq:(b + 1) * seq, :]
        ctxs = []
        for hi in range(h):
            qh = qb[:, hi * d_k:(hi + 1) * d_k]          # (seq, d_k)
            kh = kb[:, hi * d_k:(hi + 1) * d_k]          # (seq, d_k)
            vh = vb[:, hi * d_v:(hi + 1) * d_v]          # (seq, d_v)

            # QK^T via dot_general contracting on the last dims (no .T).
            s = lax.dot_general(qh, kh, (((1,), (1,)), ((), ())),
                                preferred_element_type=jnp.float32)  # (seq, seq)
            s = s - jnp.max(s, axis=-1, keepdims=True)
            p = jnp.exp(s)
            inv = pl.reciprocal(jnp.sum(p, axis=-1, keepdims=True))  # exact
            ctxs.append(jnp.dot(p * inv, vh,
                                preferred_element_type=jnp.float32))
        rows.append(jnp.concatenate(ctxs, axis=-1))       # (seq, h*d_v)
    ctx = jnp.concatenate(rows, axis=0)                   # (bb*seq, h*d_v)

    # Fused output Linear: (bb*seq, h*d_v) @ (h*d_v, d_model) + bias.
    y = jnp.dot(ctx, wo_ref[...], preferred_element_type=jnp.float32)
    y = y + b_ref[...]
    o_ref[...] = y.reshape(bb, seq, d_model).astype(o_ref.dtype)


# ------------------------------ Python wrapper ------------------------------


def _pick_batch_block(batch, seq, h):
    """Largest divisor of `batch` that keeps the unrolled kernel small."""
    best = 1
    for cand in range(1, batch + 1):
        if batch % cand:
            continue
        if cand * seq > 512:        # keep the flattened sublane extent modest
            continue
        if cand * h > 32:           # cap unrolled attention iterations
            continue
        best = cand
    return best


def multi_head_attention(q, k, v, W_q, W_k, W_v, lin_w, lin_b):
    """q, k, v: (batch, seq, d_model). Returns (batch, seq, d_model)."""
    # TODO(synk): optional mask_3d path of the reference module is not
    # implemented (the reference default is mask_3d=None).
    batch, seq, d_model = q.shape
    h, _, d_k = W_q.shape
    d_v = W_v.shape[-1]
    scale = 1.0 / math.sqrt(d_k)
    bb = _pick_batch_block(batch, seq, h)

    # Pack per-head weights so head hi occupies columns [hi*d_k, (hi+1)*d_k):
    # (h, d_model, d_k) -> (d_model, h*d_k).
    wq_packed = jnp.transpose(W_q, (1, 0, 2)).reshape(d_model, h * d_k)
    wk_packed = jnp.transpose(W_k, (1, 0, 2)).reshape(d_model, h * d_k)
    wv_packed = jnp.transpose(W_v, (1, 0, 2)).reshape(d_model, h * d_v)

    # Pre-transpose the output Linear weight once (avoids an in-kernel .T).
    wo_t = lin_w.T                                   # (h*d_v, d_model)
    bias = lin_b.reshape(1, d_model)

    kernel = functools.partial(mha_fused_kernel, bb=bb, seq=seq,
                               d_model=d_model, h=h, d_k=d_k, d_v=d_v,
                               scale=scale)

    out = pl.pallas_call(
        kernel,
        out_shape=jax.ShapeDtypeStruct((batch, seq, d_model), jnp.float32),
        grid_spec=pltpu.PrefetchScalarGridSpec(
            num_scalar_prefetch=0,
            grid=(batch // bb,),
            in_specs=[
                pl.BlockSpec((bb, seq, d_model), lambda b: (b, 0, 0)),   # q
                pl.BlockSpec((bb, seq, d_model), lambda b: (b, 0, 0)),   # k
                pl.BlockSpec((bb, seq, d_model), lambda b: (b, 0, 0)),   # v
                pl.BlockSpec((d_model, h * d_k), lambda b: (0, 0)),      # W_q packed
                pl.BlockSpec((d_model, h * d_k), lambda b: (0, 0)),      # W_k packed
                pl.BlockSpec((d_model, h * d_v), lambda b: (0, 0)),      # W_v packed
                pl.BlockSpec((h * d_v, d_model), lambda b: (0, 0)),      # lin_w^T
                pl.BlockSpec((1, d_model), lambda b: (0, 0)),            # lin_b
            ],
            out_specs=pl.BlockSpec((bb, seq, d_model), lambda b: (b, 0, 0)),
        ),
        compiler_params=pltpu.CompilerParams(
            dimension_semantics=("parallel",)),
    )(q, k, v, wq_packed, wk_packed, wv_packed, wo_t, bias)

    return out


# ---------------------------- reference (pure JAX) ---------------------------


def reference_mha(q, k, v, W_q, W_k, W_v, lin_w, lin_b):
    h, d_model, d_k = W_q.shape
    batch, seq, _ = q.shape
    qh = jnp.einsum("bsk,hkl->hbsl", q, W_q)
    kh = jnp.einsum("bsk,hkl->hbsl", k, W_k)
    vh = jnp.einsum("bsk,hkl->hbsl", v, W_v)
    scores = jnp.einsum("hbqd,hbkd->hbqk", qh, kh) / math.sqrt(d_k)
    p = jax.nn.softmax(scores, axis=-1)
    ctx = jnp.einsum("hbqk,hbkd->hbqd", p, vh)
    cat = jnp.transpose(ctx, (1, 2, 0, 3)).reshape(batch, seq, -1)
    return cat @ lin_w.T + lin_b


# ----------------------------------- main ------------------------------------

if __name__ == "__main__":
    d_model = 32
    h = 4
    d_k = d_model // h
    d_v = d_model // h
    batch = 2
    seq = 8

    key = jax.random.PRNGKey(0)
    kq, kk, kv, kw, kb = jax.random.split(key, 5)

    q = jax.random.normal(kq, (batch, seq, d_model), dtype=jnp.float32) * 0.1
    k = jax.random.normal(kk, (batch, seq, d_model), dtype=jnp.float32) * 0.1
    v = jax.random.normal(kv, (batch, seq, d_model), dtype=jnp.float32) * 0.1

    # Per-head projection weights initialized to ones (matches torch.nn.init.ones_)
    W_q = jnp.ones((h, d_model, d_k), dtype=jnp.float32)
    W_k = jnp.ones((h, d_model, d_k), dtype=jnp.float32)
    W_v = jnp.ones((h, d_model, d_v), dtype=jnp.float32)

    # Output Linear params: deterministic synthetic init (torch default is random).
    bound = 1.0 / math.sqrt(h * d_v)
    lin_w = jax.random.uniform(kw, (d_model, h * d_v), jnp.float32, -bound, bound)
    lin_b = jax.random.uniform(kb, (d_model,), jnp.float32, -bound, bound)

    out = multi_head_attention(q, k, v, W_q, W_k, W_v, lin_w, lin_b)
    out = jax.block_until_ready(out)

    ref = reference_mha(q, k, v, W_q, W_k, W_v, lin_w, lin_b)
    assert out.shape == (batch, seq, d_model)
    assert jnp.allclose(out, ref, atol=1e-4, rtol=1e-4), "mismatch vs reference"

    print("KERNEL_OK")
</pallas_src>

<mosaic_0001>
module attributes {stable_mosaic.version = 11 : i64} {
  func.func @mha_fused_kernel(%arg0: i32, %arg1: memref<2x8x32xf32, #tpu.memory_space<vmem>>, %arg2: memref<2x8x32xf32, #tpu.memory_space<vmem>>, %arg3: memref<2x8x32xf32, #tpu.memory_space<vmem>>, %arg4: memref<32x32xf32, #tpu.memory_space<vmem>>, %arg5: memref<32x32xf32, #tpu.memory_space<vmem>>, %arg6: memref<32x32xf32, #tpu.memory_space<vmem>>, %arg7: memref<32x32xf32, #tpu.memory_space<vmem>>, %arg8: memref<1x32xf32, #tpu.memory_space<vmem>>, %arg9: memref<2x8x32xf32, #tpu.memory_space<vmem>>) attributes {dimension_semantics = [#tpu.dimension_semantics<parallel>], iteration_bounds = array<i64: 1>, scalar_prefetch = 0 : i64, scratch_operands = 0 : i64, tpu.core_type = #tpu.core_type<tc>, window_params = [{transform_indices = @transform_0, window_bounds = array<i64: 2, 8, 32>}, {transform_indices = @transform_1, window_bounds = array<i64: 2, 8, 32>}, {transform_indices = @transform_2, window_bounds = array<i64: 2, 8, 32>}, {pipeline_mode = #tpu.pipeline_mode<synchronous>, transform_indices = @transform_3, window_bounds = array<i64: 32, 32>}, {pipeline_mode = #tpu.pipeline_mode<synchronous>, transform_indices = @transform_4, window_bounds = array<i64: 32, 32>}, {pipeline_mode = #tpu.pipeline_mode<synchronous>, transform_indices = @transform_5, window_bounds = array<i64: 32, 32>}, {pipeline_mode = #tpu.pipeline_mode<synchronous>, transform_indices = @transform_6, window_bounds = array<i64: 32, 32>}, {pipeline_mode = #tpu.pipeline_mode<synchronous>, transform_indices = @transform_7, window_bounds = array<i64: 1, 32>}, {transform_indices = @transform_8, window_bounds = array<i64: 2, 8, 32>}]} {
    %c0 = arith.constant 0 : index
    %c0_0 = arith.constant 0 : index
    %c0_1 = arith.constant 0 : index
    %0 = vector.load %arg1[%c0, %c0_0, %c0_1] : memref<2x8x32xf32, #tpu.memory_space<vmem>>, vector<2x8x32xf32>
    %1 = vector.shape_cast %0 : vector<2x8x32xf32> to vector<16x32xf32>
    %c0_2 = arith.constant 0 : index
    %c0_3 = arith.constant 0 : index
    %c0_4 = arith.constant 0 : index
    %2 = vector.load %arg2[%c0_2, %c0_3, %c0_4] : memref<2x8x32xf32, #tpu.memory_space<vmem>>, vector<2x8x32xf32>
    %3 = vector.shape_cast %2 : vector<2x8x32xf32> to vector<16x32xf32>
    %c0_5 = arith.constant 0 : index
    %c0_6 = arith.constant 0 : index
    %c0_7 = arith.constant 0 : index
    %4 = vector.load %arg3[%c0_5, %c0_6, %c0_7] : memref<2x8x32xf32, #tpu.memory_space<vmem>>, vector<2x8x32xf32>
    %5 = vector.shape_cast %4 : vector<2x8x32xf32> to vector<16x32xf32>
    %c0_8 = arith.constant 0 : index
    %c0_9 = arith.constant 0 : index
    %6 = vector.load %arg4[%c0_8, %c0_9] : memref<32x32xf32, #tpu.memory_space<vmem>>, vector<32x32xf32>
    %cst = arith.constant dense<0.000000e+00> : vector<16x32xf32>
    %7 = tpu.matmul %1, %6, %cst {dimension_numbers = #tpu.dot_dimension_numbers<[1], [0], [0], [1], [0, 0, 1, 1], [], []>} : vector<16x32xf32>, vector<32x32xf32>, vector<16x32xf32> -> vector<16x32xf32>
    %cst_10 = arith.constant 0.353553385 : f32
    %8 = vector.broadcast %cst_10 : f32 to vector<16x32xf32>
    %9 = arith.mulf %7, %8 : vector<16x32xf32>
    %c0_11 = arith.constant 0 : index
    %c0_12 = arith.constant 0 : index
    %10 = vector.load %arg5[%c0_11, %c0_12] : memref<32x32xf32, #tpu.memory_space<vmem>>, vector<32x32xf32>
    %cst_13 = arith.constant dense<0.000000e+00> : vector<16x32xf32>
    %11 = tpu.matmul %3, %10, %cst_13 {dimension_numbers = #tpu.dot_dimension_numbers<[1], [0], [0], [1], [0, 0, 1, 1], [], []>} : vector<16x32xf32>, vector<32x32xf32>, vector<16x32xf32> -> vector<16x32xf32>
    %c0_14 = arith.constant 0 : index
    %c0_15 = arith.constant 0 : index
    %12 = vector.load %arg6[%c0_14, %c0_15] : memref<32x32xf32, #tpu.memory_space<vmem>>, vector<32x32xf32>
    %cst_16 = arith.constant dense<0.000000e+00> : vector<16x32xf32>
    %13 = tpu.matmul %5, %12, %cst_16 {dimension_numbers = #tpu.dot_dimension_numbers<[1], [0], [0], [1], [0, 0, 1, 1], [], []>} : vector<16x32xf32>, vector<32x32xf32>, vector<16x32xf32> -> vector<16x32xf32>
    %14 = vector.extract_strided_slice %9 {offsets = [0, 0], sizes = [8, 32], strides = [1, 1]} : vector<16x32xf32> to vector<8x32xf32>
    %15 = vector.extract_strided_slice %11 {offsets = [0, 0], sizes = [8, 32], strides = [1, 1]} : vector<16x32xf32> to vector<8x32xf32>
    %16 = vector.extract_strided_slice %13 {offsets = [0, 0], sizes = [8, 32], strides = [1, 1]} : vector<16x32xf32> to vector<8x32xf32>
    %17 = vector.extract_strided_slice %14 {offsets = [0, 0], sizes = [8, 8], strides = [1, 1]} : vector<8x32xf32> to vector<8x8xf32>
    %18 = vector.extract_strided_slice %15 {offsets = [0, 0], sizes = [8, 8], strides = [1, 1]} : vector<8x32xf32> to vector<8x8xf32>
    %19 = vector.extract_strided_slice %16 {offsets = [0, 0], sizes = [8, 8], strides = [1, 1]} : vector<8x32xf32> to vector<8x8xf32>
    %cst_17 = arith.constant dense<0.000000e+00> : vector<8x8xf32>
    %20 = tpu.matmul %17, %18, %cst_17 {dimension_numbers = #tpu.dot_dimension_numbers<[1], [1], [0], [0], [0, 0, 1, 0], [], []>} : vector<8x8xf32>, vector<8x8xf32>, vector<8x8xf32> -> vector<8x8xf32>
    %cst_18 = arith.constant dense<0xFF800000> : vector<8xf32>
    %21 = vector.multi_reduction <maximumf>, %20, %cst_18 [1] : vector<8x8xf32> to vector<8xf32>
    %22 = vector.shape_cast %21 : vector<8xf32> to vector<8x1xf32>
    %23 = vector.broadcast %22 : vector<8x1xf32> to vector<8x8xf32>
    %24 = arith.subf %20, %23 : vector<8x8xf32>
    %25 = math.exp %24 : vector<8x8xf32>
    %cst_19 = arith.constant dense<0.000000e+00> : vector<8xf32>
    %26 = vector.multi_reduction <add>, %25, %cst_19 [1] : vector<8x8xf32> to vector<8xf32>
    %27 = vector.shape_cast %26 : vector<8xf32> to vector<8x1xf32>
    %28 = tpu.reciprocal %27 : vector<8x1xf32> -> vector<8x1xf32>
    %29 = vector.broadcast %28 : vector<8x1xf32> to vector<8x8xf32>
    %30 = arith.mulf %25, %29 : vector<8x8xf32>
    %cst_20 = arith.constant dense<0.000000e+00> : vector<8x8xf32>
    %31 = tpu.matmul %30, %19, %cst_20 {dimension_numbers = #tpu.dot_dimension_numbers<[1], [0], [0], [1], [0, 0, 1, 1], [], []>} : vector<8x8xf32>, vector<8x8xf32>, vector<8x8xf32> -> vector<8x8xf32>
    %32 = vector.extract_strided_slice %14 {offsets = [0, 8], sizes = [8, 8], strides = [1, 1]} : vector<8x32xf32> to vector<8x8xf32>
    %33 = vector.extract_strided_slice %15 {offsets = [0, 8], sizes = [8, 8], strides = [1, 1]} : vector<8x32xf32> to vector<8x8xf32>
    %34 = vector.extract_strided_slice %16 {offsets = [0, 8], sizes = [8, 8], strides = [1, 1]} : vector<8x32xf32> to vector<8x8xf32>
    %cst_21 = arith.constant dense<0.000000e+00> : vector<8x8xf32>
    %35 = tpu.matmul %32, %33, %cst_21 {dimension_numbers = #tpu.dot_dimension_numbers<[1], [1], [0], [0], [0, 0, 1, 0], [], []>} : vector<8x8xf32>, vector<8x8xf32>, vector<8x8xf32> -> vector<8x8xf32>
    %cst_22 = arith.constant dense<0xFF800000> : vector<8xf32>
    %36 = vector.multi_reduction <maximumf>, %35, %cst_22 [1] : vector<8x8xf32> to vector<8xf32>
    %37 = vector.shape_cast %36 : vector<8xf32> to vector<8x1xf32>
    %38 = vector.broadcast %37 : vector<8x1xf32> to vector<8x8xf32>
    %39 = arith.subf %35, %38 : vector<8x8xf32>
    %40 = math.exp %39 : vector<8x8xf32>
    %cst_23 = arith.constant dense<0.000000e+00> : vector<8xf32>
    %41 = vector.multi_reduction <add>, %40, %cst_23 [1] : vector<8x8xf32> to vector<8xf32>
    %42 = vector.shape_cast %41 : vector<8xf32> to vector<8x1xf32>
    %43 = tpu.reciprocal %42 : vector<8x1xf32> -> vector<8x1xf32>
    %44 = vector.broadcast %43 : vector<8x1xf32> to vector<8x8xf32>
    %45 = arith.mulf %40, %44 : vector<8x8xf32>
    %cst_24 = arith.constant dense<0.000000e+00> : vector<8x8xf32>
    %46 = tpu.matmul %45, %34, %cst_24 {dimension_numbers = #tpu.dot_dimension_numbers<[1], [0], [0], [1], [0, 0, 1, 1], [], []>} : vector<8x8xf32>, vector<8x8xf32>, vector<8x8xf32> -> vector<8x8xf32>
    %47 = vector.extract_strided_slice %14 {offsets = [0, 16], sizes = [8, 8], strides = [1, 1]} : vector<8x32xf32> to vector<8x8xf32>
    %48 = vector.extract_strided_slice %15 {offsets = [0, 16], sizes = [8, 8], strides = [1, 1]} : vector<8x32xf32> to vector<8x8xf32>
    %49 = vector.extract_strided_slice %16 {offsets = [0, 16], sizes = [8, 8], strides = [1, 1]} : vector<8x32xf32> to vector<8x8xf32>
    %cst_25 = arith.constant dense<0.000000e+00> : vector<8x8xf32>
    %50 = tpu.matmul %47, %48, %cst_25 {dimension_numbers = #tpu.dot_dimension_numbers<[1], [1], [0], [0], [0, 0, 1, 0], [], []>} : vector<8x8xf32>, vector<8x8xf32>, vector<8x8xf32> -> vector<8x8xf32>
    %cst_26 = arith.constant dense<0xFF800000> : vector<8xf32>
    %51 = vector.multi_reduction <maximumf>, %50, %cst_26 [1] : vector<8x8xf32> to vector<8xf32>
    %52 = vector.shape_cast %51 : vector<8xf32> to vector<8x1xf32>
    %53 = vector.broadcast %52 : vector<8x1xf32> to vector<8x8xf32>
    %54 = arith.subf %50, %53 : vector<8x8xf32>
    %55 = math.exp %54 : vector<8x8xf32>
    %cst_27 = arith.constant dense<0.000000e+00> : vector<8xf32>
    %56 = vector.multi_reduction <add>, %55, %cst_27 [1] : vector<8x8xf32> to vector<8xf32>
    %57 = vector.shape_cast %56 : vector<8xf32> to vector<8x1xf32>
    %58 = tpu.reciprocal %57 : vector<8x1xf32> -> vector<8x1xf32>
    %59 = vector.broadcast %58 : vector<8x1xf32> to vector<8x8xf32>
    %60 = arith.mulf %55, %59 : vector<8x8xf32>
    %cst_28 = arith.constant dense<0.000000e+00> : vector<8x8xf32>
    %61 = tpu.matmul %60, %49, %cst_28 {dimension_numbers = #tpu.dot_dimension_numbers<[1], [0], [0], [1], [0, 0, 1, 1], [], []>} : vector<8x8xf32>, vector<8x8xf32>, vector<8x8xf32> -> vector<8x8xf32>
    %62 = vector.extract_strided_slice %14 {offsets = [0, 24], sizes = [8, 8], strides = [1, 1]} : vector<8x32xf32> to vector<8x8xf32>
    %63 = vector.extract_strided_slice %15 {offsets = [0, 24], sizes = [8, 8], strides = [1, 1]} : vector<8x32xf32> to vector<8x8xf32>
    %64 = vector.extract_strided_slice %16 {offsets = [0, 24], sizes = [8, 8], strides = [1, 1]} : vector<8x32xf32> to vector<8x8xf32>
    %cst_29 = arith.constant dense<0.000000e+00> : vector<8x8xf32>
    %65 = tpu.matmul %62, %63, %cst_29 {dimension_numbers = #tpu.dot_dimension_numbers<[1], [1], [0], [0], [0, 0, 1, 0], [], []>} : vector<8x8xf32>, vector<8x8xf32>, vector<8x8xf32> -> vector<8x8xf32>
    %cst_30 = arith.constant dense<0xFF800000> : vector<8xf32>
    %66 = vector.multi_reduction <maximumf>, %65, %cst_30 [1] : vector<8x8xf32> to vector<8xf32>
    %67 = vector.shape_cast %66 : vector<8xf32> to vector<8x1xf32>
    %68 = vector.broadcast %67 : vector<8x1xf32> to vector<8x8xf32>
    %69 = arith.subf %65, %68 : vector<8x8xf32>
    %70 = math.exp %69 : vector<8x8xf32>
    %cst_31 = arith.constant dense<0.000000e+00> : vector<8xf32>
    %71 = vector.multi_reduction <add>, %70, %cst_31 [1] : vector<8x8xf32> to vector<8xf32>
    %72 = vector.shape_cast %71 : vector<8xf32> to vector<8x1xf32>
    %73 = tpu.reciprocal %72 : vector<8x1xf32> -> vector<8x1xf32>
    %74 = vector.broadcast %73 : vector<8x1xf32> to vector<8x8xf32>
    %75 = arith.mulf %70, %74 : vector<8x8xf32>
    %cst_32 = arith.constant dense<0.000000e+00> : vector<8x8xf32>
    %76 = tpu.matmul %75, %64, %cst_32 {dimension_numbers = #tpu.dot_dimension_numbers<[1], [0], [0], [1], [0, 0, 1, 1], [], []>} : vector<8x8xf32>, vector<8x8xf32>, vector<8x8xf32> -> vector<8x8xf32>
    %77 = tpu.concatenate %31, %46, %61, %76 in 1 : vector<8x8xf32>, vector<8x8xf32>, vector<8x8xf32>, vector<8x8xf32> -> vector<8x32xf32>
    %78 = vector.extract_strided_slice %9 {offsets = [8, 0], sizes = [8, 32], strides = [1, 1]} : vector<16x32xf32> to vector<8x32xf32>
    %79 = vector.extract_strided_slice %11 {offsets = [8, 0], sizes = [8, 32], strides = [1, 1]} : vector<16x32xf32> to vector<8x32xf32>
    %80 = vector.extract_strided_slice %13 {offsets = [8, 0], sizes = [8, 32], strides = [1, 1]} : vector<16x32xf32> to vector<8x32xf32>
    %81 = vector.extract_strided_slice %78 {offsets = [0, 0], sizes = [8, 8], strides = [1, 1]} : vector<8x32xf32> to vector<8x8xf32>
    %82 = vector.extract_strided_slice %79 {offsets = [0, 0], sizes = [8, 8], strides = [1, 1]} : vector<8x32xf32> to vector<8x8xf32>
    %83 = vector.extract_strided_slice %80 {offsets = [0, 0], sizes = [8, 8], strides = [1, 1]} : vector<8x32xf32> to vector<8x8xf32>
    %cst_33 = arith.constant dense<0.000000e+00> : vector<8x8xf32>
    %84 = tpu.matmul %81, %82, %cst_33 {dimension_numbers = #tpu.dot_dimension_numbers<[1], [1], [0], [0], [0, 0, 1, 0], [], []>} : vector<8x8xf32>, vector<8x8xf32>, vector<8x8xf32> -> vector<8x8xf32>
    %cst_34 = arith.constant dense<0xFF800000> : vector<8xf32>
    %85 = vector.multi_reduction <maximumf>, %84, %cst_34 [1] : vector<8x8xf32> to vector<8xf32>
    %86 = vector.shape_cast %85 : vector<8xf32> to vector<8x1xf32>
    %87 = vector.broadcast %86 : vector<8x1xf32> to vector<8x8xf32>
    %88 = arith.subf %84, %87 : vector<8x8xf32>
    %89 = math.exp %88 : vector<8x8xf32>
    %cst_35 = arith.constant dense<0.000000e+00> : vector<8xf32>
    %90 = vector.multi_reduction <add>, %89, %cst_35 [1] : vector<8x8xf32> to vector<8xf32>
    %91 = vector.shape_cast %90 : vector<8xf32> to vector<8x1xf32>
    %92 = tpu.reciprocal %91 : vector<8x1xf32> -> vector<8x1xf32>
    %93 = vector.broadcast %92 : vector<8x1xf32> to vector<8x8xf32>
    %94 = arith.mulf %89, %93 : vector<8x8xf32>
    %cst_36 = arith.constant dense<0.000000e+00> : vector<8x8xf32>
    %95 = tpu.matmul %94, %83, %cst_36 {dimension_numbers = #tpu.dot_dimension_numbers<[1], [0], [0], [1], [0, 0, 1, 1], [], []>} : vector<8x8xf32>, vector<8x8xf32>, vector<8x8xf32> -> vector<8x8xf32>
    %96 = vector.extract_strided_slice %78 {offsets = [0, 8], sizes = [8, 8], strides = [1, 1]} : vector<8x32xf32> to vector<8x8xf32>
    %97 = vector.extract_strided_slice %79 {offsets = [0, 8], sizes = [8, 8], strides = [1, 1]} : vector<8x32xf32> to vector<8x8xf32>
    %98 = vector.extract_strided_slice %80 {offsets = [0, 8], sizes = [8, 8], strides = [1, 1]} : vector<8x32xf32> to vector<8x8xf32>
    %cst_37 = arith.constant dense<0.000000e+00> : vector<8x8xf32>
    %99 = tpu.matmul %96, %97, %cst_37 {dimension_numbers = #tpu.dot_dimension_numbers<[1], [1], [0], [0], [0, 0, 1, 0], [], []>} : vector<8x8xf32>, vector<8x8xf32>, vector<8x8xf32> -> vector<8x8xf32>
    %cst_38 = arith.constant dense<0xFF800000> : vector<8xf32>
    %100 = vector.multi_reduction <maximumf>, %99, %cst_38 [1] : vector<8x8xf32> to vector<8xf32>
    %101 = vector.shape_cast %100 : vector<8xf32> to vector<8x1xf32>
    %102 = vector.broadcast %101 : vector<8x1xf32> to vector<8x8xf32>
    %103 = arith.subf %99, %102 : vector<8x8xf32>
    %104 = math.exp %103 : vector<8x8xf32>
    %cst_39 = arith.constant dense<0.000000e+00> : vector<8xf32>
    %105 = vector.multi_reduction <add>, %104, %cst_39 [1] : vector<8x8xf32> to vector<8xf32>
    %106 = vector.shape_cast %105 : vector<8xf32> to vector<8x1xf32>
    %107 = tpu.reciprocal %106 : vector<8x1xf32> -> vector<8x1xf32>
    %108 = vector.broadcast %107 : vector<8x1xf32> to vector<8x8xf32>
    %109 = arith.mulf %104, %108 : vector<8x8xf32>
    %cst_40 = arith.constant dense<0.000000e+00> : vector<8x8xf32>
    %110 = tpu.matmul %109, %98, %cst_40 {dimension_numbers = #tpu.dot_dimension_numbers<[1], [0], [0], [1], [0, 0, 1, 1], [], []>} : vector<8x8xf32>, vector<8x8xf32>, vector<8x8xf32> -> vector<8x8xf32>
    %111 = vector.extract_strided_slice %78 {offsets = [0, 16], sizes = [8, 8], strides = [1, 1]} : vector<8x32xf32> to vector<8x8xf32>
    %112 = vector.extract_strided_slice %79 {offsets = [0, 16], sizes = [8, 8], strides = [1, 1]} : vector<8x32xf32> to vector<8x8xf32>
    %113 = vector.extract_strided_slice %80 {offsets = [0, 16], sizes = [8, 8], strides = [1, 1]} : vector<8x32xf32> to vector<8x8xf32>
    %cst_41 = arith.constant dense<0.000000e+00> : vector<8x8xf32>
    %114 = tpu.matmul %111, %112, %cst_41 {dimension_numbers = #tpu.dot_dimension_numbers<[1], [1], [0], [0], [0, 0, 1, 0], [], []>} : vector<8x8xf32>, vector<8x8xf32>, vector<8x8xf32> -> vector<8x8xf32>
    %cst_42 = arith.constant dense<0xFF800000> : vector<8xf32>
    %115 = vector.multi_reduction <maximumf>, %114, %cst_42 [1] : vector<8x8xf32> to vector<8xf32>
    %116 = vector.shape_cast %115 : vector<8xf32> to vector<8x1xf32>
    %117 = vector.broadcast %116 : vector<8x1xf32> to vector<8x8xf32>
    %118 = arith.subf %114, %117 : vector<8x8xf32>
    %119 = math.exp %118 : vector<8x8xf32>
    %cst_43 = arith.constant dense<0.000000e+00> : vector<8xf32>
    %120 = vector.multi_reduction <add>, %119, %cst_43 [1] : vector<8x8xf32> to vector<8xf32>
    %121 = vector.shape_cast %120 : vector<8xf32> to vector<8x1xf32>
    %122 = tpu.reciprocal %121 : vector<8x1xf32> -> vector<8x1xf32>
    %123 = vector.broadcast %122 : vector<8x1xf32> to vector<8x8xf32>
    %124 = arith.mulf %119, %123 : vector<8x8xf32>
    %cst_44 = arith.constant dense<0.000000e+00> : vector<8x8xf32>
    %125 = tpu.matmul %124, %113, %cst_44 {dimension_numbers = #tpu.dot_dimension_numbers<[1], [0], [0], [1], [0, 0, 1, 1], [], []>} : vector<8x8xf32>, vector<8x8xf32>, vector<8x8xf32> -> vector<8x8xf32>
    %126 = vector.extract_strided_slice %78 {offsets = [0, 24], sizes = [8, 8], strides = [1, 1]} : vector<8x32xf32> to vector<8x8xf32>
    %127 = vector.extract_strided_slice %79 {offsets = [0, 24], sizes = [8, 8], strides = [1, 1]} : vector<8x32xf32> to vector<8x8xf32>
    %128 = vector.extract_strided_slice %80 {offsets = [0, 24], sizes = [8, 8], strides = [1, 1]} : vector<8x32xf32> to vector<8x8xf32>
    %cst_45 = arith.constant dense<0.000000e+00> : vector<8x8xf32>
    %129 = tpu.matmul %126, %127, %cst_45 {dimension_numbers = #tpu.dot_dimension_numbers<[1], [1], [0], [0], [0, 0, 1, 0], [], []>} : vector<8x8xf32>, vector<8x8xf32>, vector<8x8xf32> -> vector<8x8xf32>
    %cst_46 = arith.constant dense<0xFF800000> : vector<8xf32>
    %130 = vector.multi_reduction <maximumf>, %129, %cst_46 [1] : vector<8x8xf32> to vector<8xf32>
    %131 = vector.shape_cast %130 : vector<8xf32> to vector<8x1xf32>
    %132 = vector.broadcast %131 : vector<8x1xf32> to vector<8x8xf32>
    %133 = arith.subf %129, %132 : vector<8x8xf32>
    %134 = math.exp %133 : vector<8x8xf32>
    %cst_47 = arith.constant dense<0.000000e+00> : vector<8xf32>
    %135 = vector.multi_reduction <add>, %134, %cst_47 [1] : vector<8x8xf32> to vector<8xf32>
    %136 = vector.shape_cast %135 : vector<8xf32> to vector<8x1xf32>
    %137 = tpu.reciprocal %136 : vector<8x1xf32> -> vector<8x1xf32>
    %138 = vector.broadcast %137 : vector<8x1xf32> to vector<8x8xf32>
    %139 = arith.mulf %134, %138 : vector<8x8xf32>
    %cst_48 = arith.constant dense<0.000000e+00> : vector<8x8xf32>
    %140 = tpu.matmul %139, %128, %cst_48 {dimension_numbers = #tpu.dot_dimension_numbers<[1], [0], [0], [1], [0, 0, 1, 1], [], []>} : vector<8x8xf32>, vector<8x8xf32>, vector<8x8xf32> -> vector<8x8xf32>
    %141 = tpu.concatenate %95, %110, %125, %140 in 1 : vector<8x8xf32>, vector<8x8xf32>, vector<8x8xf32>, vector<8x8xf32> -> vector<8x32xf32>
    %142 = tpu.concatenate %77, %141 in 0 : vector<8x32xf32>, vector<8x32xf32> -> vector<16x32xf32>
    %c0_49 = arith.constant 0 : index
    %c0_50 = arith.constant 0 : index
    %143 = vector.load %arg7[%c0_49, %c0_50] : memref<32x32xf32, #tpu.memory_space<vmem>>, vector<32x32xf32>
    %cst_51 = arith.constant dense<0.000000e+00> : vector<16x32xf32>
    %144 = tpu.matmul %142, %143, %cst_51 {dimension_numbers = #tpu.dot_dimension_numbers<[1], [0], [0], [1], [0, 0, 1, 1], [], []>} : vector<16x32xf32>, vector<32x32xf32>, vector<16x32xf32> -> vector<16x32xf32>
    %c0_52 = arith.constant 0 : index
    %c0_53 = arith.constant 0 : index
    %145 = vector.load %arg8[%c0_52, %c0_53] : memref<1x32xf32, #tpu.memory_space<vmem>>, vector<1x32xf32>
    %146 = vector.broadcast %145 : vector<1x32xf32> to vector<16x32xf32>
    %147 = arith.addf %144, %146 : vector<16x32xf32>
    %148 = vector.shape_cast %147 : vector<16x32xf32> to vector<2x8x32xf32>
    %c0_54 = arith.constant 0 : index
    %c0_55 = arith.constant 0 : index
    %c0_56 = arith.constant 0 : index
    %149 = vector.load %arg9[%c0_54, %c0_55, %c0_56] : memref<2x8x32xf32, #tpu.memory_space<vmem>>, vector<2x8x32xf32>
    tpu.vector_store %arg9[%c0_54, %c0_55, %c0_56], %148 {strides = array<i32>} : memref<2x8x32xf32, #tpu.memory_space<vmem>>, vector<2x8x32xf32>,
    return
  }
  func.func @transform_0(%arg0: i32) -> (i32, i32, i32) {
    %c0_i32 = arith.constant 0 : i32
    %c0_i32_0 = arith.constant 0 : i32
    %c0_i32_1 = arith.constant 0 : i32
    return %arg0, %c0_i32, %c0_i32_0 : i32, i32, i32
  }
  func.func @transform_1(%arg0: i32) -> (i32, i32, i32) {
    %c0_i32 = arith.constant 0 : i32
    %c0_i32_0 = arith.constant 0 : i32
    %c0_i32_1 = arith.constant 0 : i32
    return %arg0, %c0_i32, %c0_i32_0 : i32, i32, i32
  }
  func.func @transform_2(%arg0: i32) -> (i32, i32, i32) {
    %c0_i32 = arith.constant 0 : i32
    %c0_i32_0 = arith.constant 0 : i32
    %c0_i32_1 = arith.constant 0 : i32
    return %arg0, %c0_i32, %c0_i32_0 : i32, i32, i32
  }
  func.func @transform_3(%arg0: i32) -> (i32, i32) {
    %c0_i32 = arith.constant 0 : i32
    %c0_i32_0 = arith.constant 0 : i32
    %c0_i32_1 = arith.constant 0 : i32
    return %c0_i32, %c0_i32_0 : i32, i32
  }
  func.func @transform_4(%arg0: i32) -> (i32, i32) {
    %c0_i32 = arith.constant 0 : i32
    %c0_i32_0 = arith.constant 0 : i32
    %c0_i32_1 = arith.constant 0 : i32
    return %c0_i32, %c0_i32_0 : i32, i32
  }
  func.func @transform_5(%arg0: i32) -> (i32, i32) {
    %c0_i32 = arith.constant 0 : i32
    %c0_i32_0 = arith.constant 0 : i32
    %c0_i32_1 = arith.constant 0 : i32
    return %c0_i32, %c0_i32_0 : i32, i32
  }
  func.func @transform_6(%arg0: i32) -> (i32, i32) {
    %c0_i32 = arith.constant 0 : i32
    %c0_i32_0 = arith.constant 0 : i32
    %c0_i32_1 = arith.constant 0 : i32
    return %c0_i32, %c0_i32_0 : i32, i32
  }
  func.func @transform_7(%arg0: i32) -> (i32, i32) {
    %c0_i32 = arith.constant 0 : i32
    %c0_i32_0 = arith.constant 0 : i32
    %c0_i32_1 = arith.constant 0 : i32
    return %c0_i32, %c0_i32_0 : i32, i32
  }
  func.func @transform_8(%arg0: i32) -> (i32, i32, i32) {
    %c0_i32 = arith.constant 0 : i32
    %c0_i32_0 = arith.constant 0 : i32
    %c0_i32_1 = arith.constant 0 : i32
    return %arg0, %c0_i32, %c0_i32_0 : i32, i32, i32
  }
}

</mosaic_0001>

<llo_original>
// kernel: tpu_custom_call.1
$region0: #{tpu_custom_call.1}
  #allocation0 [shape = 'u32[]', space=smem, size = 0x4, offset = 0x4, fixed_abs, tag = 'smem constant byte address 0x4 - core index']
  #allocation1 [shape = 'u32[144,128]{1,0:T(1,128)}', space=vmem, size = 0x12000, scoped, tag = 'internal scratch']
  %s0 = inlined_call_operand.hbm [shape: f32[2,8,32], index: 0, kind: input, shape index: {}]
  %s1 = inlined_call_operand.hbm [shape: f32[2,8,32], index: 1, kind: input, shape index: {}]
  %s2 = inlined_call_operand.hbm [shape: f32[2,8,32], index: 2, kind: input, shape index: {}]
  %s3 = inlined_call_operand.hbm [shape: f32[32,32], index: 3, kind: input, shape index: {}]
  %s4 = inlined_call_operand.hbm [shape: f32[32,32], index: 4, kind: input, shape index: {}]
  %s5 = inlined_call_operand.hbm [shape: f32[32,32], index: 5, kind: input, shape index: {}]
  %s6 = inlined_call_operand.hbm [shape: f32[32,32], index: 6, kind: input, shape index: {}]
  %s7 = inlined_call_operand.vmem [shape: f32[1,32], index: 7, kind: input, shape index: {}]
  %s8 = inlined_call_operand.hbm [shape: f32[2,8,32], index: 8, kind: output, shape index: {}]
  %s9 = sld [smem:[#allocation0]]
  $region70: #{tpu_custom_call.1} parent=0
    _
  %s11 = ssub.s32 1, %s9
  %s12 = scalar_select 0, %s11, %s9
  $region1: #{tpu_custom_call.1} parent=0
    #allocation2 [shape = 'u8[8192]{0}', space=vmem, size = 0x2000, scoped, tag = 'input window, operand 0, single buffered']
    #allocation3 [shape = 's32[1]{0}', space=sflag, size = 0x4, scoped, tag = 'scoped memory for tpu_custom_call.1']
    #allocation4 [shape = 's32[1]{0}', space=sflag, size = 0x4, scoped, tag = 'scoped memory for tpu_custom_call.1']
    #allocation5 [shape = 'u8[8192]{0}', space=vmem, size = 0x2000, scoped, tag = 'input window, operand 1, single buffered']
    #allocation6 [shape = 's32[1]{0}', space=sflag, size = 0x4, scoped, tag = 'scoped memory for tpu_custom_call.1']
    #allocation7 [shape = 'u8[8192]{0}', space=vmem, size = 0x2000, scoped, tag = 'input window, operand 2, single buffered']
    #allocation8 [shape = 'u8[16384]{0}', space=vmem, size = 0x4000, scoped, tag = 'input window, operand 3, single buffered']
    #allocation9 [shape = 's32[1]{0}', space=sflag, size = 0x4, scoped, tag = 'scoped memory for tpu_custom_call.1']
    #allocation10 [shape = 'u8[16384]{0}', space=vmem, size = 0x4000, scoped, tag = 'input window, operand 4, single buffered']
    #allocation11 [shape = 'u8[16384]{0}', space=vmem, size = 0x4000, scoped, tag = 'input window, operand 5, single buffered']
    #allocation12 [shape = 's32[1]{0}', space=sflag, size = 0x4, scoped, tag = 'scoped memory for tpu_custom_call.1']
    #allocation13 [shape = 'u8[16384]{0}', space=vmem, size = 0x4000, scoped, tag = 'input window, operand 6, single buffered']
    #allocation14 [shape = 'u8[8192]{0}', space=vmem, size = 0x2000, scoped, tag = 'output window, operand 0, single buffered']
    %13 = vsyncpa [#allocation3], 0
    %14 = vsyncpa [#allocation6], 0
    %15 = vsyncpa [#allocation9], 0
    %16 = vsyncpa [#allocation12], 0
    %17 = vsyncpa [#allocation4], 0
    // Predicated region
    $region2: #{tpu_custom_call.1} parent=1 // pred_check
      _
    $region3: #{tpu_custom_call.1} parent=1 // pred_check_branch
      %19 = sbr.rel (0) target = $region5
    $region4: #{tpu_custom_call.1} parent=1 // pred_region
      %s21 = ssub.s32 256, 256
      %22 = vsyncadd [#allocation3], %s21
      %s23 = sshll.u32 [#allocation2], 4
      %s24 = int_to_ptr.vmem [resolvable:$true] %s23
      %29 = dma.hbm_to_vmem [thread:$0]  %s0, 256, %s24, [#allocation3], 128, 128, 8
    $region5: #{tpu_custom_call.1} parent=1 // pred_fallthru
      _
    // Predicated region
    $region6: #{tpu_custom_call.1} parent=1 // pred_check
      _
    $region7: #{tpu_custom_call.1} parent=1 // pred_check_branch
      %31 = sbr.rel (0) target = $region9
    $region8: #{tpu_custom_call.1} parent=1 // pred_region
      %s33 = ssub.s32 256, 256
      %34 = vsyncadd [#allocation6], %s33
      %s35 = sshll.u32 [#allocation5], 4
      %s36 = int_to_ptr.vmem [resolvable:$true] %s35
      %41 = dma.hbm_to_vmem [thread:$0]  %s1, 256, %s36, [#allocation6], 128, 128, 8
    $region9: #{tpu_custom_call.1} parent=1 // pred_fallthru
      _
    // Predicated region
    $region10: #{tpu_custom_call.1} parent=1 // pred_check
      _
    $region11: #{tpu_custom_call.1} parent=1 // pred_check_branch
      %43 = sbr.rel (0) target = $region13
    $region12: #{tpu_custom_call.1} parent=1 // pred_region
      %s45 = ssub.s32 256, 256
      %46 = vsyncadd [#allocation6], %s45
      %s47 = sshll.u32 [#allocation7], 4
      %s48 = int_to_ptr.vmem [resolvable:$true] %s47
      %53 = dma.hbm_to_vmem [thread:$0]  %s2, 256, %s48, [#allocation6], 128, 128, 8
    $region13: #{tpu_custom_call.1} parent=1 // pred_fallthru
      _
    // Predicated region
    $region14: #{tpu_custom_call.1} parent=1 // pred_check
      _
    $region15: #{tpu_custom_call.1} parent=1 // pred_check_branch
      %55 = sbr.rel (0) target = $region17
    $region16: #{tpu_custom_call.1} parent=1 // pred_region
      %s57 = ssub.s32 512, 512
      %58 = vsyncadd [#allocation9], %s57
      %s59 = sshll.u32 [#allocation8], 4
      %s60 = int_to_ptr.vmem [resolvable:$true] %s59
      %65 = dma.hbm_to_vmem [thread:$0]  %s3, 512, %s60, [#allocation9], 128, 128, 8
    $region17: #{tpu_custom_call.1} parent=1 // pred_fallthru
      _
    // Predicated region
    $region18: #{tpu_custom_call.1} parent=1 // pred_check
      _
    $region19: #{tpu_custom_call.1} parent=1 // pred_check_branch
      %67 = sbr.rel (0) target = $region21
    $region20: #{tpu_custom_call.1} parent=1 // pred_region
      %s69 = ssub.s32 512, 512
      %70 = vsyncadd [#allocation9], %s69
      %s71 = sshll.u32 [#allocation10], 4
      %s72 = int_to_ptr.vmem [resolvable:$true] %s71
      %77 = dma.hbm_to_vmem [thread:$0]  %s4, 512, %s72, [#allocation9], 128, 128, 8
    $region21: #{tpu_custom_call.1} parent=1 // pred_fallthru
      _
    // Predicated region
    $region22: #{tpu_custom_call.1} parent=1 // pred_check
      _
    $region23: #{tpu_custom_call.1} parent=1 // pred_check_branch
      %79 = sbr.rel (0) target = $region25
    $region24: #{tpu_custom_call.1} parent=1 // pred_region
      %s81 = ssub.s32 512, 512
      %82 = vsyncadd [#allocation12], %s81
      %s83 = sshll.u32 [#allocation11], 4
      %s84 = int_to_ptr.vmem [resolvable:$true] %s83
      %89 = dma.hbm_to_vmem [thread:$0]  %s5, 512, %s84, [#allocation12], 128, 128, 8
    $region25: #{tpu_custom_call.1} parent=1 // pred_fallthru
      _
    // Predicated region
    $region26: #{tpu_custom_call.1} parent=1 // pred_check
      _
    $region27: #{tpu_custom_call.1} parent=1 // pred_check_branch
      %91 = sbr.rel (0) target = $region29
    $region28: #{tpu_custom_call.1} parent=1 // pred_region
      %s93 = ssub.s32 512, 512
      %94 = vsyncadd [#allocation12], %s93
      %s95 = sshll.u32 [#allocation13], 4
      %s96 = int_to_ptr.vmem [resolvable:$true] %s95
      %101 = dma.hbm_to_vmem [thread:$0]  %s6, 512, %s96, [#allocation12], 128, 128, 8
    $region29: #{tpu_custom_call.1} parent=1 // pred_fallthru
      _
    // Predicated region
    $region30: #{tpu_custom_call.1} parent=1 // pred_check
      _
    $region31: #{tpu_custom_call.1} parent=1 // pred_check_branch
      %103 = sbr.rel (0) target = $region33
    $region32: #{tpu_custom_call.1} parent=1 // pred_region
      _
    $region33: #{tpu_custom_call.1} parent=1 // pred_fallthru
      _
    // Predicated region
    $region34: #{tpu_custom_call.1} parent=1 // pred_check
      _
    $region35: #{tpu_custom_call.1} parent=1 // pred_check_branch
      %105 = sbr.rel (0) target = $region37
    $region36: #{tpu_custom_call.1} parent=1 // pred_region
      %106 = dma.done [#allocation3], 256
    $region37: #{tpu_custom_call.1} parent=1 // pred_fallthru
      _
    // Predicated region
    $region38: #{tpu_custom_call.1} parent=1 // pred_check
      _
    $region39: #{tpu_custom_call.1} parent=1 // pred_check_branch
      %108 = sbr.rel (0) target = $region41
    $region40: #{tpu_custom_call.1} parent=1 // pred_region
      %109 = dma.done [#allocation6], 256
    $region41: #{tpu_custom_call.1} parent=1 // pred_fallthru
      _
    // Predicated region
    $region42: #{tpu_custom_call.1} parent=1 // pred_check
      _
    $region43: #{tpu_custom_call.1} parent=1 // pred_check_branch
      %111 = sbr.rel (0) target = $region45
    $region44: #{tpu_custom_call.1} parent=1 // pred_region
      %112 = dma.done [#allocation6], 256
    $region45: #{tpu_custom_call.1} parent=1 // pred_fallthru
      _
    // Predicated region
    $region46: #{tpu_custom_call.1} parent=1 // pred_check
      _
    $region47: #{tpu_custom_call.1} parent=1 // pred_check_branch
      %114 = sbr.rel (0) target = $region49
    $region48: #{tpu_custom_call.1} parent=1 // pred_region
      %115 = dma.done [#allocation9], 512
    $region49: #{tpu_custom_call.1} parent=1 // pred_fallthru
      _
    // Predicated region
    $region50: #{tpu_custom_call.1} parent=1 // pred_check
      _
    $region51: #{tpu_custom_call.1} parent=1 // pred_check_branch
      %117 = sbr.rel (0) target = $region53
    $region52: #{tpu_custom_call.1} parent=1 // pred_region
      %118 = dma.done [#allocation9], 512
    $region53: #{tpu_custom_call.1} parent=1 // pred_fallthru
      _
    // Predicated region
    $region54: #{tpu_custom_call.1} parent=1 // pred_check
      _
    $region55: #{tpu_custom_call.1} parent=1 // pred_check_branch
      %120 = sbr.rel (0) target = $region57
    $region56: #{tpu_custom_call.1} parent=1 // pred_region
      %121 = dma.done [#allocation12], 512
    $region57: #{tpu_custom_call.1} parent=1 // pred_fallthru
      _
    // Predicated region
    $region58: #{tpu_custom_call.1} parent=1 // pred_check
      _
    $region59: #{tpu_custom_call.1} parent=1 // pred_check_branch
      %123 = sbr.rel (0) target = $region61
    $region60: #{tpu_custom_call.1} parent=1 // pred_region
      %124 = dma.done [#allocation12], 512
    $region61: #{tpu_custom_call.1} parent=1 // pred_fallthru
      _
    %v125 = vld [vmem:[#allocation2] sm:$0xff]
    %v126 = vld [vmem:[#allocation2 + $0x8] sm:$0xff]
    %v127 = vld [vmem:[#allocation5] sm:$0xff]
    %v128 = vld [vmem:[#allocation5 + $0x8] sm:$0xff]
    %v129 = vld [vmem:[#allocation7] sm:$0xff]
    %v130 = vld [vmem:[#allocation7 + $0x8] sm:$0xff]
    %v131 = vld [vmem:[#allocation8] sm:$0xff]
    %v132 = vld [vmem:[#allocation8 + $0x8] sm:$0xff]
    %v133 = vld [vmem:[#allocation8 + $0x10] sm:$0xff]
    %v134 = vld [vmem:[#allocation8 + $0x18] sm:$0xff]
    %vm135 = vcmask 261120
    %v137 = vsel %vm135, %v125, 0
    %v140 = vsel %vm135, %v126, 0
    %142 = vmatprep.subr.mxu0 0.0
    %143 = vmatpush1.msra.mxu0 %v131
    %144 = vmatprep.subr.mxu0 0.0
    %145 = vmatpush1.msra.mxu0 %v132
    %146 = vmatprep.subr.mxu0 0.0
    %147 = vmatpush1.msra.mxu0 %v133
    %148 = vmatprep.subr.mxu0 0.0
    %149 = vmatpush1.msra.mxu0 %v134
    %150 = vmatprep.subr.mxu0 0.0
    %151 = vmatpush1.msra.mxu0 0.0
    %152 = vmatprep.subr.mxu0 0.0
    %153 = vmatpush1.msra.mxu0 0.0
    %154 = vmatprep.subr.mxu0 0.0
    %155 = vmatpush1.msra.mxu0 0.0
    %156 = vmatprep.subr.mxu0 0.0
    %157 = vmatpush1.msra.mxu0 0.0
    %158 = vmatprep.subr.mxu0 0.0
    %159 = vmatpush1.msra.mxu0 0.0
    %160 = vmatprep.subr.mxu0 0.0
    %161 = vmatpush1.msra.mxu0 0.0
    %162 = vmatprep.subr.mxu0 0.0
    %163 = vmatpush1.msra.mxu0 0.0
    %164 = vmatprep.subr.mxu0 0.0
    %165 = vmatpush1.msra.mxu0 0.0
    %166 = vmatprep.subr.mxu0 0.0
    %167 = vmatpush1.msra.mxu0 0.0
    %168 = vmatprep.subr.mxu0 0.0
    %169 = vmatpush1.msra.mxu0 0.0
    %170 = vmatprep.subr.mxu0 0.0
    %171 = vmatpush1.msra.mxu0 0.0
    %172 = vmatprep.subr.mxu0 0.0
    %173 = vmatpush1.msra.mxu0 0.0
    %174 = vmatprep.subr.mxu0 0.0
    %175 = vmatpush1.msra.mxu0 0.0
    %176 = vmatprep.subr.mxu0 0.0
    %177 = vmatpush1.msra.mxu0 0.0
    %178 = vmatprep.subr.mxu0 0.0
    %179 = vmatpush1.msra.mxu0 0.0
    %180 = vmatprep.subr.mxu0 0.0
    %181 = vmatpush1.msra.mxu0 0.0
    %182 = vmatprep.subr.mxu0 0.0
    %183 = vmatpush1.msra.mxu0 0.0
    %184 = vmatprep.subr.mxu0 0.0
    %185 = vmatpush1.msra.mxu0 0.0
    %186 = vmatprep.subr.mxu0 0.0
    %187 = vmatpush1.msra.mxu0 0.0
    %188 = vmatprep.subr.mxu0 0.0
    %189 = vmatpush1.msra.mxu0 0.0
    %190 = vmatprep.subr.mxu0 0.0
    %191 = vmatpush1.msra.mxu0 0.0
    %192 = vmatprep.subr.mxu0 0.0
    %193 = vmatpush1.msra.mxu0 0.0
    %194 = vmatprep.subr.mxu0 0.0
    %195 = vmatpush1.msra.mxu0 0.0
    %196 = vmatprep.subr.mxu0 0.0
    %197 = vmatpush1.msra.mxu0 0.0
    %198 = vmatprep.subr.mxu0 0.0
    %199 = vmatpush1.msra.mxu0 0.0
    %200 = vmatprep.subr.mxu0 0.0
    %201 = vmatpush1.msra.mxu0 0.0
    %202 = vmatprep.subr.mxu0 0.0
    %203 = vmatpush1.msra.mxu0 0.0
    %204 = vmatprep.subr.mxu0 0.0
    %205 = vmatpush1.msra.mxu0 0.0
    %206 = vmatprep.mubr.f32.mxu0 0.0
    %207 = vmatmul.mubr.f32.gmra.mrb[0].mxu0 %v137
    %v208 = vpop.f32.mrb[0].mxu0
    %v209 = vadd.f32 0.0, %v208
    %v210 = vpop.f32.mrb[0].mxu0
    %211 = vmatprep.mubr.f32.mxu0 0.0
    %212 = vmatmul.mubr.f32.gmra.mrb[0].mxu0 %v140
    %v213 = vpop.f32.mrb[0].mxu0
    %v214 = vadd.f32 0.0, %v213
    %v215 = vpop.f32.mrb[0].mxu0
    %216 = vdwg.mxu0
    %v217 = vmul.f32 %v209, 0.35355338
    %v218 = vmul.f32 %v214, 0.35355338
    %v219 = vld [vmem:[#allocation10] sm:$0xff]
    %v220 = vld [vmem:[#allocation10 + $0x8] sm:$0xff]
    %v221 = vld [vmem:[#allocation10 + $0x10] sm:$0xff]
    %v222 = vld [vmem:[#allocation10 + $0x18] sm:$0xff]
    %v224 = vsel %vm135, %v127, 0
    %v227 = vsel %vm135, %v128, 0
    %229 = vmatprep.subr.mxu0 0.0
    %230 = vmatpush1.msra.mxu0 %v219
    %231 = vmatprep.subr.mxu0 0.0
    %232 = vmatpush1.msra.mxu0 %v220
    %233 = vmatprep.subr.mxu0 0.0
    %234 = vmatpush1.msra.mxu0 %v221
    %235 = vmatprep.subr.mxu0 0.0
    %236 = vmatpush1.msra.mxu0 %v222
    %237 = vmatprep.subr.mxu0 0.0
    %238 = vmatpush1.msra.mxu0 0.0
    %239 = vmatprep.subr.mxu0 0.0
    %240 = vmatpush1.msra.mxu0 0.0
    %241 = vmatprep.subr.mxu0 0.0
    %242 = vmatpush1.msra.mxu0 0.0
    %243 = vmatprep.subr.mxu0 0.0
    %244 = vmatpush1.msra.mxu0 0.0
    %245 = vmatprep.subr.mxu0 0.0
    %246 = vmatpush1.msra.mxu0 0.0
    %247 = vmatprep.subr.mxu0 0.0
    %248 = vmatpush1.msra.mxu0 0.0
    %249 = vmatprep.subr.mxu0 0.0
    %250 = vmatpush1.msra.mxu0 0.0
    %251 = vmatprep.subr.mxu0 0.0
    %252 = vmatpush1.msra.mxu0 0.0
    %253 = vmatprep.subr.mxu0 0.0
    %254 = vmatpush1.msra.mxu0 0.0
    %255 = vmatprep.subr.mxu0 0.0
    %256 = vmatpush1.msra.mxu0 0.0
    %257 = vmatprep.subr.mxu0 0.0
    %258 = vmatpush1.msra.mxu0 0.0
    %259 = vmatprep.subr.mxu0 0.0
    %260 = vmatpush1.msra.mxu0 0.0
    %261 = vmatprep.subr.mxu0 0.0
    %262 = vmatpush1.msra.mxu0 0.0
    %263 = vmatprep.subr.mxu0 0.0
    %264 = vmatpush1.msra.mxu0 0.0
    %265 = vmatprep.subr.mxu0 0.0
    %266 = vmatpush1.msra.mxu0 0.0
    %267 = vmatprep.subr.mxu0 0.0
    %268 = vmatpush1.msra.mxu0 0.0
    %269 = vmatprep.subr.mxu0 0.0
    %270 = vmatpush1.msra.mxu0 0.0
    %271 = vmatprep.subr.mxu0 0.0
    %272 = vmatpush1.msra.mxu0 0.0
    %273 = vmatprep.subr.mxu0 0.0
    %274 = vmatpush1.msra.mxu0 0.0
    %275 = vmatprep.subr.mxu0 0.0
    %276 = vmatpush1.msra.mxu0 0.0
    %277 = vmatprep.subr.mxu0 0.0
    %278 = vmatpush1.msra.mxu0 0.0
    %279 = vmatprep.subr.mxu0 0.0
    %280 = vmatpush1.msra.mxu0 0.0
    %281 = vmatprep.subr.mxu0 0.0
    %282 = vmatpush1.msra.mxu0 0.0
    %283 = vmatprep.subr.mxu0 0.0
    %284 = vmatpush1.msra.mxu0 0.0
    %285 = vmatprep.subr.mxu0 0.0
    %286 = vmatpush1.msra.mxu0 0.0
    %287 = vmatprep.subr.mxu0 0.0
    %288 = vmatpush1.msra.mxu0 0.0
    %289 = vmatprep.subr.mxu0 0.0
    %290 = vmatpush1.msra.mxu0 0.0
    %291 = vmatprep.subr.mxu0 0.0
    %292 = vmatpush1.msra.mxu0 0.0
    %293 = vmatprep.mubr.f32.mxu0 0.0
    %294 = vmatmul.mubr.f32.gmra.mrb[0].mxu0 %v224
    %v295 = vpop.f32.mrb[0].mxu0
    %v296 = vadd.f32 0.0, %v295
    %v297 = vpop.f32.mrb[0].mxu0
    %298 = vmatprep.mubr.f32.mxu0 0.0
    %299 = vmatmul.mubr.f32.gmra.mrb[0].mxu0 %v227
    %v300 = vpop.f32.mrb[0].mxu0
    %v301 = vadd.f32 0.0, %v300
    %v302 = vpop.f32.mrb[0].mxu0
    %303 = vdwg.mxu0
    %v304 = vld [vmem:[#allocation11] sm:$0xff]
    %v305 = vld [vmem:[#allocation11 + $0x8] sm:$0xff]
    %v306 = vld [vmem:[#allocation11 + $0x10] sm:$0xff]
    %v307 = vld [vmem:[#allocation11 + $0x18] sm:$0xff]
    %v309 = vsel %vm135, %v129, 0
    %v312 = vsel %vm135, %v130, 0
    %314 = vmatprep.subr.mxu0 0.0
    %315 = vmatpush1.msra.mxu0 %v304
    %316 = vmatprep.subr.mxu0 0.0
    %317 = vmatpush1.msra.mxu0 %v305
    %318 = vmatprep.subr.mxu0 0.0
    %319 = vmatpush1.msra.mxu0 %v306
    %320 = vmatprep.subr.mxu0 0.0
    %321 = vmatpush1.msra.mxu0 %v307
    %322 = vmatprep.subr.mxu0 0.0
    %323 = vmatpush1.msra.mxu0 0.0
    %324 = vmatprep.subr.mxu0 0.0
    %325 = vmatpush1.msra.mxu0 0.0
    %326 = vmatprep.subr.mxu0 0.0
    %327 = vmatpush1.msra.mxu0 0.0
    %328 = vmatprep.subr.mxu0 0.0
    %329 = vmatpush1.msra.mxu0 0.0
    %330 = vmatprep.subr.mxu0 0.0
    %331 = vmatpush1.msra.mxu0 0.0
    %332 = vmatprep.subr.mxu0 0.0
    %333 = vmatpush1.msra.mxu0 0.0
    %334 = vmatprep.subr.mxu0 0.0
    %335 = vmatpush1.msra.mxu0 0.0
    %336 = vmatprep.subr.mxu0 0.0
    %337 = vmatpush1.msra.mxu0 0.0
    %338 = vmatprep.subr.mxu0 0.0
    %339 = vmatpush1.msra.mxu0 0.0
    %340 = vmatprep.subr.mxu0 0.0
    %341 = vmatpush1.msra.mxu0 0.0
    %342 = vmatprep.subr.mxu0 0.0
    %343 = vmatpush1.msra.mxu0 0.0
    %344 = vmatprep.subr.mxu0 0.0
    %345 = vmatpush1.msra.mxu0 0.0
    %346 = vmatprep.subr.mxu0 0.0
    %347 = vmatpush1.msra.mxu0 0.0
    %348 = vmatprep.subr.mxu0 0.0
    %349 = vmatpush1.msra.mxu0 0.0
    %350 = vmatprep.subr.mxu0 0.0
    %351 = vmatpush1.msra.mxu0 0.0
    %352 = vmatprep.subr.mxu0 0.0
    %353 = vmatpush1.msra.mxu0 0.0
    %354 = vmatprep.subr.mxu0 0.0
    %355 = vmatpush1.msra.mxu0 0.0
    %356 = vmatprep.subr.mxu0 0.0
    %357 = vmatpush1.msra.mxu0 0.0
    %358 = vmatprep.subr.mxu0 0.0
    %359 = vmatpush1.msra.mxu0 0.0
    %360 = vmatprep.subr.mxu0 0.0
    %361 = vmatpush1.msra.mxu0 0.0
    %362 = vmatprep.subr.mxu0 0.0
    %363 = vmatpush1.msra.mxu0 0.0
    %364 = vmatprep.subr.mxu0 0.0
    %365 = vmatpush1.msra.mxu0 0.0
    %366 = vmatprep.subr.mxu0 0.0
    %367 = vmatpush1.msra.mxu0 0.0
    %368 = vmatprep.subr.mxu0 0.0
    %369 = vmatpush1.msra.mxu0 0.0
    %370 = vmatprep.subr.mxu0 0.0
    %371 = vmatpush1.msra.mxu0 0.0
    %372 = vmatprep.subr.mxu0 0.0
    %373 = vmatpush1.msra.mxu0 0.0
    %374 = vmatprep.subr.mxu0 0.0
    %375 = vmatpush1.msra.mxu0 0.0
    %376 = vmatprep.subr.mxu0 0.0
    %377 = vmatpush1.msra.mxu0 0.0
    %378 = vmatprep.mubr.f32.mxu0 0.0
    %379 = vmatmul.mubr.f32.gmra.mrb[0].mxu0 %v309
    %v380 = vpop.f32.mrb[0].mxu0
    %v381 = vadd.f32 0.0, %v380
    %v382 = vpop.f32.mrb[0].mxu0
    %383 = vmatprep.mubr.f32.mxu0 0.0
    %384 = vmatmul.mubr.f32.gmra.mrb[0].mxu0 %v312
    %v385 = vpop.f32.mrb[0].mxu0
    %v386 = vadd.f32 0.0, %v385
    %v387 = vpop.f32.mrb[0].mxu0
    %388 = vdwg.mxu0
    %vm389 = vcmask 64512
    %v391 = vsel %vm389, %v217, 0
    %v394 = vsel %vm389, %v296, 0
    %396 = vmatprep.subr.mxu0 0.0
    %397 = vmatpush1.xpose.msra.mxu0 %v394
    %398 = vmatprep.subr.mxu0 0.0
    %399 = vmatpush1.xpose.msra.mxu0 0.0
    %400 = vmatprep.subr.mxu0 0.0
    %401 = vmatpush1.xpose.msra.mxu0 0.0
    %402 = vmatprep.subr.mxu0 0.0
    %403 = vmatpush1.xpose.msra.mxu0 0.0
    %404 = vmatprep.subr.mxu0 0.0
    %405 = vmatpush1.xpose.msra.mxu0 0.0
    %406 = vmatprep.subr.mxu0 0.0
    %407 = vmatpush1.xpose.msra.mxu0 0.0
    %408 = vmatprep.subr.mxu0 0.0
    %409 = vmatpush1.xpose.msra.mxu0 0.0
    %410 = vmatprep.subr.mxu0 0.0
    %411 = vmatpush1.xpose.msra.mxu0 0.0
    %412 = vmatprep.subr.mxu0 0.0
    %413 = vmatpush1.xpose.msra.mxu0 0.0
    %414 = vmatprep.subr.mxu0 0.0
    %415 = vmatpush1.xpose.msra.mxu0 0.0
    %416 = vmatprep.subr.mxu0 0.0
    %417 = vmatpush1.xpose.msra.mxu0 0.0
    %418 = vmatprep.subr.mxu0 0.0
    %419 = vmatpush1.xpose.msra.mxu0 0.0
    %420 = vmatprep.subr.mxu0 0.0
    %421 = vmatpush1.xpose.msra.mxu0 0.0
    %422 = vmatprep.subr.mxu0 0.0
    %423 = vmatpush1.xpose.msra.mxu0 0.0
    %424 = vmatprep.subr.mxu0 0.0
    %425 = vmatpush1.xpose.msra.mxu0 0.0
    %426 = vmatprep.subr.mxu0 0.0
    %427 = vmatpush1.xpose.msra.mxu0 0.0
    %428 = vmatprep.subr.mxu0 0.0
    %429 = vmatpush1.xpose.msra.mxu0 0.0
    %430 = vmatprep.subr.mxu0 0.0
    %431 = vmatpush1.xpose.msra.mxu0 0.0
    %432 = vmatprep.subr.mxu0 0.0
    %433 = vmatpush1.xpose.msra.mxu0 0.0
    %434 = vmatprep.subr.mxu0 0.0
    %435 = vmatpush1.xpose.msra.mxu0 0.0
    %436 = vmatprep.subr.mxu0 0.0
    %437 = vmatpush1.xpose.msra.mxu0 0.0
    %438 = vmatprep.subr.mxu0 0.0
    %439 = vmatpush1.xpose.msra.mxu0 0.0
    %440 = vmatprep.subr.mxu0 0.0
    %441 = vmatpush1.xpose.msra.mxu0 0.0
    %442 = vmatprep.subr.mxu0 0.0
    %443 = vmatpush1.xpose.msra.mxu0 0.0
    %444 = vmatprep.subr.mxu0 0.0
    %445 = vmatpush1.xpose.msra.mxu0 0.0
    %446 = vmatprep.subr.mxu0 0.0
    %447 = vmatpush1.xpose.msra.mxu0 0.0
    %448 = vmatprep.subr.mxu0 0.0
    %449 = vmatpush1.xpose.msra.mxu0 0.0
    %450 = vmatprep.subr.mxu0 0.0
    %451 = vmatpush1.xpose.msra.mxu0 0.0
    %452 = vmatprep.subr.mxu0 0.0
    %453 = vmatpush1.xpose.msra.mxu0 0.0
    %454 = vmatprep.subr.mxu0 0.0
    %455 = vmatpush1.xpose.msra.mxu0 0.0
    %456 = vmatprep.subr.mxu0 0.0
    %457 = vmatpush1.xpose.msra.mxu0 0.0
    %458 = vmatprep.subr.mxu0 0.0
    %459 = vmatpush1.xpose.msra.mxu0 0.0
    %460 = vmatprep.mubr.f32.mxu0 0.0
    %461 = vmatmul.mubr.f32.gmra.mrb[0].mxu0 %v391
    %v462 = vpop.f32.mrb[0].mxu0
    %v463 = vadd.f32 0.0, %v462
    %v464 = vpop.f32.mrb[0].mxu0
    %465 = vdwg.mxu0
    %v466 = vsel %vm389, %v463, -inf
    %467 = vmax.xlane.f32.xlu0 %v466
    %v468 = vpop.xlane.xlu0 %467
    %v469 = vsub.f32 %v463, %v468
    %v470 = vmul.f32 %v469, 1.442695
    %v471 = vpow.pop %v470
    %v472 = vsel %vm389, %v471, 0.0
    %473 = vadd.xlane.f32.xlu0 %v472
    %v474 = vpop.xlane.xlu0 %473
    %v475 = vrcp.pop %v474
    %v476 = vmul.f32 %v471, %v475
    %v478 = vsel %vm389, %v476, 0
    %480 = vmatprep.subr.mxu0 0.0
    %481 = vmatpush1.msra.mxu0 %v381
    %482 = vmatprep.subr.mxu0 0.0
    %483 = vmatpush1.msra.mxu0 0.0
    %484 = vmatprep.subr.mxu0 0.0
    %485 = vmatpush1.msra.mxu0 0.0
    %486 = vmatprep.subr.mxu0 0.0
    %487 = vmatpush1.msra.mxu0 0.0
    %488 = vmatprep.subr.mxu0 0.0
    %489 = vmatpush1.msra.mxu0 0.0
    %490 = vmatprep.subr.mxu0 0.0
    %491 = vmatpush1.msra.mxu0 0.0
    %492 = vmatprep.subr.mxu0 0.0
    %493 = vmatpush1.msra.mxu0 0.0
    %494 = vmatprep.subr.mxu0 0.0
    %495 = vmatpush1.msra.mxu0 0.0
    %496 = vmatprep.subr.mxu0 0.0
    %497 = vmatpush1.msra.mxu0 0.0
    %498 = vmatprep.subr.mxu0 0.0
    %499 = vmatpush1.msra.mxu0 0.0
    %500 = vmatprep.subr.mxu0 0.0
    %501 = vmatpush1.msra.mxu0 0.0
    %502 = vmatprep.subr.mxu0 0.0
    %503 = vmatpush1.msra.mxu0 0.0
    %504 = vmatprep.subr.mxu0 0.0
    %505 = vmatpush1.msra.mxu0 0.0
    %506 = vmatprep.subr.mxu0 0.0
    %507 = vmatpush1.msra.mxu0 0.0
    %508 = vmatprep.subr.mxu0 0.0
    %509 = vmatpush1.msra.mxu0 0.0
    %510 = vmatprep.subr.mxu0 0.0
    %511 = vmatpush1.msra.mxu0 0.0
    %512 = vmatprep.subr.mxu0 0.0
    %513 = vmatpush1.msra.mxu0 0.0
    %514 = vmatprep.subr.mxu0 0.0
    %515 = vmatpush1.msra.mxu0 0.0
    %516 = vmatprep.subr.mxu0 0.0
    %517 = vmatpush1.msra.mxu0 0.0
    %518 = vmatprep.subr.mxu0 0.0
    %519 = vmatpush1.msra.mxu0 0.0
    %520 = vmatprep.subr.mxu0 0.0
    %521 = vmatpush1.msra.mxu0 0.0
    %522 = vmatprep.subr.mxu0 0.0
    %523 = vmatpush1.msra.mxu0 0.0
    %524 = vmatprep.subr.mxu0 0.0
    %525 = vmatpush1.msra.mxu0 0.0
    %526 = vmatprep.subr.mxu0 0.0
    %527 = vmatpush1.msra.mxu0 0.0
    %528 = vmatprep.subr.mxu0 0.0
    %529 = vmatpush1.msra.mxu0 0.0
    %530 = vmatprep.subr.mxu0 0.0
    %531 = vmatpush1.msra.mxu0 0.0
    %532 = vmatprep.subr.mxu0 0.0
    %533 = vmatpush1.msra.mxu0 0.0
    %534 = vmatprep.subr.mxu0 0.0
    %535 = vmatpush1.msra.mxu0 0.0
    %536 = vmatprep.subr.mxu0 0.0
    %537 = vmatpush1.msra.mxu0 0.0
    %538 = vmatprep.subr.mxu0 0.0
    %539 = vmatpush1.msra.mxu0 0.0
    %540 = vmatprep.subr.mxu0 0.0
    %541 = vmatpush1.msra.mxu0 0.0
    %542 = vmatprep.subr.mxu0 0.0
    %543 = vmatpush1.msra.mxu0 0.0
    %544 = vmatprep.mubr.f32.mxu0 0.0
    %545 = vmatmul.mubr.f32.gmra.mrb[0].mxu0 %v478
    %v546 = vpop.f32.mrb[0].mxu0
    %v547 = vadd.f32 0.0, %v546
    %v548 = vpop.f32.mrb[0].mxu0
    %549 = vdwg.mxu0
    %550 = vrot.lane.b32.xlu0 %v217, 120
    %v551 = vpop.permute.xlu0 %550
    %552 = vrot.lane.b32.xlu0 %v296, 120
    %v553 = vpop.permute.xlu0 %552
    %v554 = vsel %vm389, %v551, 0
    %v556 = vsel %vm389, %v553, 0
    %558 = vmatprep.subr.mxu0 0.0
    %559 = vmatpush1.xpose.msra.mxu0 %v556
    %560 = vmatprep.subr.mxu0 0.0
    %561 = vmatpush1.xpose.msra.mxu0 0.0
    %562 = vmatprep.subr.mxu0 0.0
    %563 = vmatpush1.xpose.msra.mxu0 0.0
    %564 = vmatprep.subr.mxu0 0.0
    %565 = vmatpush1.xpose.msra.mxu0 0.0
    %566 = vmatprep.subr.mxu0 0.0
    %567 = vmatpush1.xpose.msra.mxu0 0.0
    %568 = vmatprep.subr.mxu0 0.0
    %569 = vmatpush1.xpose.msra.mxu0 0.0
    %570 = vmatprep.subr.mxu0 0.0
    %571 = vmatpush1.xpose.msra.mxu0 0.0
    %572 = vmatprep.subr.mxu0 0.0
    %573 = vmatpush1.xpose.msra.mxu0 0.0
    %574 = vmatprep.subr.mxu0 0.0
    %575 = vmatpush1.xpose.msra.mxu0 0.0
    %576 = vmatprep.subr.mxu0 0.0
    %577 = vmatpush1.xpose.msra.mxu0 0.0
    %578 = vmatprep.subr.mxu0 0.0
    %579 = vmatpush1.xpose.msra.mxu0 0.0
    %580 = vmatprep.subr.mxu0 0.0
    %581 = vmatpush1.xpose.msra.mxu0 0.0
    %582 = vmatprep.subr.mxu0 0.0
    %583 = vmatpush1.xpose.msra.mxu0 0.0
    %584 = vmatprep.subr.mxu0 0.0
    %585 = vmatpush1.xpose.msra.mxu0 0.0
    %586 = vmatprep.subr.mxu0 0.0
    %587 = vmatpush1.xpose.msra.mxu0 0.0
    %588 = vmatprep.subr.mxu0 0.0
    %589 = vmatpush1.xpose.msra.mxu0 0.0
    %590 = vmatprep.subr.mxu0 0.0
    %591 = vmatpush1.xpose.msra.mxu0 0.0
    %592 = vmatprep.subr.mxu0 0.0
    %593 = vmatpush1.xpose.msra.mxu0 0.0
    %594 = vmatprep.subr.mxu0 0.0
    %595 = vmatpush1.xpose.msra.mxu0 0.0
    %596 = vmatprep.subr.mxu0 0.0
    %597 = vmatpush1.xpose.msra.mxu0 0.0
    %598 = vmatprep.subr.mxu0 0.0
    %599 = vmatpush1.xpose.msra.mxu0 0.0
    %600 = vmatprep.subr.mxu0 0.0
    %601 = vmatpush1.xpose.msra.mxu0 0.0
    %602 = vmatprep.subr.mxu0 0.0
    %603 = vmatpush1.xpose.msra.mxu0 0.0
    %604 = vmatprep.subr.mxu0 0.0
    %605 = vmatpush1.xpose.msra.mxu0 0.0
    %606 = vmatprep.subr.mxu0 0.0
    %607 = vmatpush1.xpose.msra.mxu0 0.0
    %608 = vmatprep.subr.mxu0 0.0
    %609 = vmatpush1.xpose.msra.mxu0 0.0
    %610 = vmatprep.subr.mxu0 0.0
    %611 = vmatpush1.xpose.msra.mxu0 0.0
    %612 = vmatprep.subr.mxu0 0.0
    %613 = vmatpush1.xpose.msra.mxu0 0.0
    %614 = vmatprep.subr.mxu0 0.0
    %615 = vmatpush1.xpose.msra.mxu0 0.0
    %616 = vmatprep.subr.mxu0 0.0
    %617 = vmatpush1.xpose.msra.mxu0 0.0
    %618 = vmatprep.subr.mxu0 0.0
    %619 = vmatpush1.xpose.msra.mxu0 0.0
    %620 = vmatprep.subr.mxu0 0.0
    %621 = vmatpush1.xpose.msra.mxu0 0.0
    %622 = vmatprep.mubr.f32.mxu0 0.0
    %623 = vmatmul.mubr.f32.gmra.mrb[0].mxu0 %v554
    %v624 = vpop.f32.mrb[0].mxu0
    %v625 = vadd.f32 0.0, %v624
    %v626 = vpop.f32.mrb[0].mxu0
    %627 = vdwg.mxu0
    %v628 = vsel %vm389, %v625, -inf
    %629 = vmax.xlane.f32.xlu0 %v628
    %v630 = vpop.xlane.xlu0 %629
    %v631 = vsub.f32 %v625, %v630
    %v632 = vmul.f32 %v631, 1.442695
    %v633 = vpow.pop %v632
    %v634 = vsel %vm389, %v633, 0.0
    %635 = vadd.xlane.f32.xlu0 %v634
    %v636 = vpop.xlane.xlu0 %635
    %v637 = vrcp.pop %v636
    %v638 = vmul.f32 %v633, %v637
    %640 = vrot.lane.b32.xlu0 %v381, 120
    %v641 = vpop.permute.xlu0 %640
    %v644 = vsel %vm389, %v638, 0
    %646 = vmatprep.subr.mxu0 0.0
    %647 = vmatpush1.msra.mxu0 %v641
    %648 = vmatprep.subr.mxu0 0.0
    %649 = vmatpush1.msra.mxu0 0.0
    %650 = vmatprep.subr.mxu0 0.0
    %651 = vmatpush1.msra.mxu0 0.0
    %652 = vmatprep.subr.mxu0 0.0
    %653 = vmatpush1.msra.mxu0 0.0
    %654 = vmatprep.subr.mxu0 0.0
    %655 = vmatpush1.msra.mxu0 0.0
    %656 = vmatprep.subr.mxu0 0.0
    %657 = vmatpush1.msra.mxu0 0.0
    %658 = vmatprep.subr.mxu0 0.0
    %659 = vmatpush1.msra.mxu0 0.0
    %660 = vmatprep.subr.mxu0 0.0
    %661 = vmatpush1.msra.mxu0 0.0
    %662 = vmatprep.subr.mxu0 0.0
    %663 = vmatpush1.msra.mxu0 0.0
    %664 = vmatprep.subr.mxu0 0.0
    %665 = vmatpush1.msra.mxu0 0.0
    %666 = vmatprep.subr.mxu0 0.0
    %667 = vmatpush1.msra.mxu0 0.0
    %668 = vmatprep.subr.mxu0 0.0
    %669 = vmatpush1.msra.mxu0 0.0
    %670 = vmatprep.subr.mxu0 0.0
    %671 = vmatpush1.msra.mxu0 0.0
    %672 = vmatprep.subr.mxu0 0.0
    %673 = vmatpush1.msra.mxu0 0.0
    %674 = vmatprep.subr.mxu0 0.0
    %675 = vmatpush1.msra.mxu0 0.0
    %676 = vmatprep.subr.mxu0 0.0
    %677 = vmatpush1.msra.mxu0 0.0
    %678 = vmatprep.subr.mxu0 0.0
    %679 = vmatpush1.msra.mxu0 0.0
    %680 = vmatprep.subr.mxu0 0.0
    %681 = vmatpush1.msra.mxu0 0.0
    %682 = vmatprep.subr.mxu0 0.0
    %683 = vmatpush1.msra.mxu0 0.0
    %684 = vmatprep.subr.mxu0 0.0
    %685 = vmatpush1.msra.mxu0 0.0
    %686 = vmatprep.subr.mxu0 0.0
    %687 = vmatpush1.msra.mxu0 0.0
    %688 = vmatprep.subr.mxu0 0.0
    %689 = vmatpush1.msra.mxu0 0.0
    %690 = vmatprep.subr.mxu0 0.0
    %691 = vmatpush1.msra.mxu0 0.0
    %692 = vmatprep.subr.mxu0 0.0
    %693 = vmatpush1.msra.mxu0 0.0
    %694 = vmatprep.subr.mxu0 0.0
    %695 = vmatpush1.msra.mxu0 0.0
    %696 = vmatprep.subr.mxu0 0.0
    %697 = vmatpush1.msra.mxu0 0.0
    %698 = vmatprep.subr.mxu0 0.0
    %699 = vmatpush1.msra.mxu0 0.0
    %700 = vmatprep.subr.mxu0 0.0
    %701 = vmatpush1.msra.mxu0 0.0
    %702 = vmatprep.subr.mxu0 0.0
    %703 = vmatpush1.msra.mxu0 0.0
    %704 = vmatprep.subr.mxu0 0.0
    %705 = vmatpush1.msra.mxu0 0.0
    %706 = vmatprep.subr.mxu0 0.0
    %707 = vmatpush1.msra.mxu0 0.0
    %708 = vmatprep.subr.mxu0 0.0
    %709 = vmatpush1.msra.mxu0 0.0
    %710 = vmatprep.mubr.f32.mxu0 0.0
    %711 = vmatmul.mubr.f32.gmra.mrb[0].mxu0 %v644
    %v712 = vpop.f32.mrb[0].mxu0
    %v713 = vadd.f32 0.0, %v712
    %v714 = vpop.f32.mrb[0].mxu0
    %715 = vdwg.mxu0
    %716 = vrot.lane.b32.xlu0 %v217, 112
    %v717 = vpop.permute.xlu0 %716
    %718 = vrot.lane.b32.xlu0 %v296, 112
    %v719 = vpop.permute.xlu0 %718
    %v720 = vsel %vm389, %v717, 0
    %v722 = vsel %vm389, %v719, 0
    %724 = vmatprep.subr.mxu0 0.0
    %725 = vmatpush1.xpose.msra.mxu0 %v722
    %726 = vmatprep.subr.mxu0 0.0
    %727 = vmatpush1.xpose.msra.mxu0 0.0
    %728 = vmatprep.subr.mxu0 0.0
    %729 = vmatpush1.xpose.msra.mxu0 0.0
    %730 = vmatprep.subr.mxu0 0.0
    %731 = vmatpush1.xpose.msra.mxu0 0.0
    %732 = vmatprep.subr.mxu0 0.0
    %733 = vmatpush1.xpose.msra.mxu0 0.0
    %734 = vmatprep.subr.mxu0 0.0
    %735 = vmatpush1.xpose.msra.mxu0 0.0
    %736 = vmatprep.subr.mxu0 0.0
    %737 = vmatpush1.xpose.msra.mxu0 0.0
    %738 = vmatprep.subr.mxu0 0.0
    %739 = vmatpush1.xpose.msra.mxu0 0.0
    %740 = vmatprep.subr.mxu0 0.0
    %741 = vmatpush1.xpose.msra.mxu0 0.0
    %742 = vmatprep.subr.mxu0 0.0
    %743 = vmatpush1.xpose.msra.mxu0 0.0
    %744 = vmatprep.subr.mxu0 0.0
    %745 = vmatpush1.xpose.msra.mxu0 0.0
    %746 = vmatprep.subr.mxu0 0.0
    %747 = vmatpush1.xpose.msra.mxu0 0.0
    %748 = vmatprep.subr.mxu0 0.0
    %749 = vmatpush1.xpose.msra.mxu0 0.0
    %750 = vmatprep.subr.mxu0 0.0
    %751 = vmatpush1.xpose.msra.mxu0 0.0
    %752 = vmatprep.subr.mxu0 0.0
    %753 = vmatpush1.xpose.msra.mxu0 0.0
    %754 = vmatprep.subr.mxu0 0.0
    %755 = vmatpush1.xpose.msra.mxu0 0.0
    %756 = vmatprep.subr.mxu0 0.0
    %757 = vmatpush1.xpose.msra.mxu0 0.0
    %758 = vmatprep.subr.mxu0 0.0
    %759 = vmatpush1.xpose.msra.mxu0 0.0
    %760 = vmatprep.subr.mxu0 0.0
    %761 = vmatpush1.xpose.msra.mxu0 0.0
    %762 = vmatprep.subr.mxu0 0.0
    %763 = vmatpush1.xpose.msra.mxu0 0.0
    %764 = vmatprep.subr.mxu0 0.0
    %765 = vmatpush1.xpose.msra.mxu0 0.0
    %766 = vmatprep.subr.mxu0 0.0
    %767 = vmatpush1.xpose.msra.mxu0 0.0
    %768 = vmatprep.subr.mxu0 0.0
    %769 = vmatpush1.xpose.msra.mxu0 0.0
    %770 = vmatprep.subr.mxu0 0.0
    %771 = vmatpush1.xpose.msra.mxu0 0.0
    %772 = vmatprep.subr.mxu0 0.0
    %773 = vmatpush1.xpose.msra.mxu0 0.0
    %774 = vmatprep.subr.mxu0 0.0
    %775 = vmatpush1.xpose.msra.mxu0 0.0
    %776 = vmatprep.subr.mxu0 0.0
    %777 = vmatpush1.xpose.msra.mxu0 0.0
    %778 = vmatprep.subr.mxu0 0.0
    %779 = vmatpush1.xpose.msra.mxu0 0.0
    %780 = vmatprep.subr.mxu0 0.0
    %781 = vmatpush1.xpose.msra.mxu0 0.0
    %782 = vmatprep.subr.mxu0 0.0
    %783 = vmatpush1.xpose.msra.mxu0 0.0
    %784 = vmatprep.subr.mxu0 0.0
    %785 = vmatpush1.xpose.msra.mxu0 0.0
    %786 = vmatprep.subr.mxu0 0.0
    %787 = vmatpush1.xpose.msra.mxu0 0.0
    %788 = vmatprep.mubr.f32.mxu0 0.0
    %789 = vmatmul.mubr.f32.gmra.mrb[0].mxu0 %v720
    %v790 = vpop.f32.mrb[0].mxu0
    %v791 = vadd.f32 0.0, %v790
    %v792 = vpop.f32.mrb[0].mxu0
    %793 = vdwg.mxu0
    %v794 = vsel %vm389, %v791, -inf
    %795 = vmax.xlane.f32.xlu0 %v794
    %v796 = vpop.xlane.xlu0 %795
    %v797 = vsub.f32 %v791, %v796
    %v798 = vmul.f32 %v797, 1.442695
    %v799 = vpow.pop %v798
    %v800 = vsel %vm389, %v799, 0.0
    %801 = vadd.xlane.f32.xlu0 %v800
    %v802 = vpop.xlane.xlu0 %801
    %v803 = vrcp.pop %v802
    %v804 = vmul.f32 %v799, %v803
    %805 = vrot.lane.b32.xlu0 %v381, 112
    %v806 = vpop.permute.xlu0 %805
    %v809 = vsel %vm389, %v804, 0
    %811 = vmatprep.subr.mxu0 0.0
    %812 = vmatpush1.msra.mxu0 %v806
    %813 = vmatprep.subr.mxu0 0.0
    %814 = vmatpush1.msra.mxu0 0.0
    %815 = vmatprep.subr.mxu0 0.0
    %816 = vmatpush1.msra.mxu0 0.0
    %817 = vmatprep.subr.mxu0 0.0
    %818 = vmatpush1.msra.mxu0 0.0
    %819 = vmatprep.subr.mxu0 0.0
    %820 = vmatpush1.msra.mxu0 0.0
    %821 = vmatprep.subr.mxu0 0.0
    %822 = vmatpush1.msra.mxu0 0.0
    %823 = vmatprep.subr.mxu0 0.0
    %824 = vmatpush1.msra.mxu0 0.0
    %825 = vmatprep.subr.mxu0 0.0
    %826 = vmatpush1.msra.mxu0 0.0
    %827 = vmatprep.subr.mxu0 0.0
    %828 = vmatpush1.msra.mxu0 0.0
    %829 = vmatprep.subr.mxu0 0.0
    %830 = vmatpush1.msra.mxu0 0.0
    %831 = vmatprep.subr.mxu0 0.0
    %832 = vmatpush1.msra.mxu0 0.0
    %833 = vmatprep.subr.mxu0 0.0
    %834 = vmatpush1.msra.mxu0 0.0
    %835 = vmatprep.subr.mxu0 0.0
    %836 = vmatpush1.msra.mxu0 0.0
    %837 = vmatprep.subr.mxu0 0.0
    %838 = vmatpush1.msra.mxu0 0.0
    %839 = vmatprep.subr.mxu0 0.0
    %840 = vmatpush1.msra.mxu0 0.0
    %841 = vmatprep.subr.mxu0 0.0
    %842 = vmatpush1.msra.mxu0 0.0
    %843 = vmatprep.subr.mxu0 0.0
    %844 = vmatpush1.msra.mxu0 0.0
    %845 = vmatprep.subr.mxu0 0.0
    %846 = vmatpush1.msra.mxu0 0.0
    %847 = vmatprep.subr.mxu0 0.0
    %848 = vmatpush1.msra.mxu0 0.0
    %849 = vmatprep.subr.mxu0 0.0
    %850 = vmatpush1.msra.mxu0 0.0
    %851 = vmatprep.subr.mxu0 0.0
    %852 = vmatpush1.msra.mxu0 0.0
    %853 = vmatprep.subr.mxu0 0.0
    %854 = vmatpush1.msra.mxu0 0.0
    %855 = vmatprep.subr.mxu0 0.0
    %856 = vmatpush1.msra.mxu0 0.0
    %857 = vmatprep.subr.mxu0 0.0
    %858 = vmatpush1.msra.mxu0 0.0
    %859 = vmatprep.subr.mxu0 0.0
    %860 = vmatpush1.msra.mxu0 0.0
    %861 = vmatprep.subr.mxu0 0.0
    %862 = vmatpush1.msra.mxu0 0.0
    %863 = vmatprep.subr.mxu0 0.0
    %864 = vmatpush1.msra.mxu0 0.0
    %865 = vmatprep.subr.mxu0 0.0
    %866 = vmatpush1.msra.mxu0 0.0
    %867 = vmatprep.subr.mxu0 0.0
    %868 = vmatpush1.msra.mxu0 0.0
    %869 = vmatprep.subr.mxu0 0.0
    %870 = vmatpush1.msra.mxu0 0.0
    %871 = vmatprep.subr.mxu0 0.0
    %872 = vmatpush1.msra.mxu0 0.0
    %873 = vmatprep.subr.mxu0 0.0
    %874 = vmatpush1.msra.mxu0 0.0
    %875 = vmatprep.mubr.f32.mxu0 0.0
    %876 = vmatmul.mubr.f32.gmra.mrb[0].mxu0 %v809
    %v877 = vpop.f32.mrb[0].mxu0
    %v878 = vadd.f32 0.0, %v877
    %v879 = vpop.f32.mrb[0].mxu0
    %880 = vdwg.mxu0
    %881 = vrot.lane.b32.xlu0 %v217, 104
    %v882 = vpop.permute.xlu0 %881
    %883 = vrot.lane.b32.xlu0 %v296, 104
    %v884 = vpop.permute.xlu0 %883
    %v885 = vsel %vm389, %v882, 0
    %v887 = vsel %vm389, %v884, 0
    %889 = vmatprep.subr.mxu0 0.0
    %890 = vmatpush1.xpose.msra.mxu0 %v887
    %891 = vmatprep.subr.mxu0 0.0
    %892 = vmatpush1.xpose.msra.mxu0 0.0
    %893 = vmatprep.subr.mxu0 0.0
    %894 = vmatpush1.xpose.msra.mxu0 0.0
    %895 = vmatprep.subr.mxu0 0.0
    %896 = vmatpush1.xpose.msra.mxu0 0.0
    %897 = vmatprep.subr.mxu0 0.0
    %898 = vmatpush1.xpose.msra.mxu0 0.0
    %899 = vmatprep.subr.mxu0 0.0
    %900 = vmatpush1.xpose.msra.mxu0 0.0
    %901 = vmatprep.subr.mxu0 0.0
    %902 = vmatpush1.xpose.msra.mxu0 0.0
    %903 = vmatprep.subr.mxu0 0.0
    %904 = vmatpush1.xpose.msra.mxu0 0.0
    %905 = vmatprep.subr.mxu0 0.0
    %906 = vmatpush1.xpose.msra.mxu0 0.0
    %907 = vmatprep.subr.mxu0 0.0
    %908 = vmatpush1.xpose.msra.mxu0 0.0
    %909 = vmatprep.subr.mxu0 0.0
    %910 = vmatpush1.xpose.msra.mxu0 0.0
    %911 = vmatprep.subr.mxu0 0.0
    %912 = vmatpush1.xpose.msra.mxu0 0.0
    %913 = vmatprep.subr.mxu0 0.0
    %914 = vmatpush1.xpose.msra.mxu0 0.0
    %915 = vmatprep.subr.mxu0 0.0
    %916 = vmatpush1.xpose.msra.mxu0 0.0
    %917 = vmatprep.subr.mxu0 0.0
    %918 = vmatpush1.xpose.msra.mxu0 0.0
    %919 = vmatprep.subr.mxu0 0.0
    %920 = vmatpush1.xpose.msra.mxu0 0.0
    %921 = vmatprep.subr.mxu0 0.0
    %922 = vmatpush1.xpose.msra.mxu0 0.0
    %923 = vmatprep.subr.mxu0 0.0
    %924 = vmatpush1.xpose.msra.mxu0 0.0
    %925 = vmatprep.subr.mxu0 0.0
    %926 = vmatpush1.xpose.msra.mxu0 0.0
    %927 = vmatprep.subr.mxu0 0.0
    %928 = vmatpush1.xpose.msra.mxu0 0.0
    %929 = vmatprep.subr.mxu0 0.0
    %930 = vmatpush1.xpose.msra.mxu0 0.0
    %931 = vmatprep.subr.mxu0 0.0
    %932 = vmatpush1.xpose.msra.mxu0 0.0
    %933 = vmatprep.subr.mxu0 0.0
    %934 = vmatpush1.xpose.msra.mxu0 0.0
    %935 = vmatprep.subr.mxu0 0.0
    %936 = vmatpush1.xpose.msra.mxu0 0.0
    %937 = vmatprep.subr.mxu0 0.0
    %938 = vmatpush1.xpose.msra.mxu0 0.0
    %939 = vmatprep.subr.mxu0 0.0
    %940 = vmatpush1.xpose.msra.mxu0 0.0
    %941 = vmatprep.subr.mxu0 0.0
    %942 = vmatpush1.xpose.msra.mxu0 0.0
    %943 = vmatprep.subr.mxu0 0.0
    %944 = vmatpush1.xpose.msra.mxu0 0.0
    %945 = vmatprep.subr.mxu0 0.0
    %946 = vmatpush1.xpose.msra.mxu0 0.0
    %947 = vmatprep.subr.mxu0 0.0
    %948 = vmatpush1.xpose.msra.mxu0 0.0
    %949 = vmatprep.subr.mxu0 0.0
    %950 = vmatpush1.xpose.msra.mxu0 0.0
    %951 = vmatprep.subr.mxu0 0.0
    %952 = vmatpush1.xpose.msra.mxu0 0.0
    %953 = vmatprep.mubr.f32.mxu0 0.0
    %954 = vmatmul.mubr.f32.gmra.mrb[0].mxu0 %v885
    %v955 = vpop.f32.mrb[0].mxu0
    %v956 = vadd.f32 0.0, %v955
    %v957 = vpop.f32.mrb[0].mxu0
    %958 = vdwg.mxu0
    %v959 = vsel %vm389, %v956, -inf
    %960 = vmax.xlane.f32.xlu0 %v959
    %v961 = vpop.xlane.xlu0 %960
    %v962 = vsub.f32 %v956, %v961
    %v963 = vmul.f32 %v962, 1.442695
    %v964 = vpow.pop %v963
    %v965 = vsel %vm389, %v964, 0.0
    %966 = vadd.xlane.f32.xlu0 %v965
    %v967 = vpop.xlane.xlu0 %966
    %v968 = vrcp.pop %v967
    %v969 = vmul.f32 %v964, %v968
    %970 = vrot.lane.b32.xlu0 %v381, 104
    %v971 = vpop.permute.xlu0 %970
    %v974 = vsel %vm389, %v969, 0
    %976 = vmatprep.subr.mxu0 0.0
    %977 = vmatpush1.msra.mxu0 %v971
    %978 = vmatprep.subr.mxu0 0.0
    %979 = vmatpush1.msra.mxu0 0.0
    %980 = vmatprep.subr.mxu0 0.0
    %981 = vmatpush1.msra.mxu0 0.0
    %982 = vmatprep.subr.mxu0 0.0
    %983 = vmatpush1.msra.mxu0 0.0
    %984 = vmatprep.subr.mxu0 0.0
    %985 = vmatpush1.msra.mxu0 0.0
    %986 = vmatprep.subr.mxu0 0.0
    %987 = vmatpush1.msra.mxu0 0.0
    %988 = vmatprep.subr.mxu0 0.0
    %989 = vmatpush1.msra.mxu0 0.0
    %990 = vmatprep.subr.mxu0 0.0
    %991 = vmatpush1.msra.mxu0 0.0
    %992 = vmatprep.subr.mxu0 0.0
    %993 = vmatpush1.msra.mxu0 0.0
    %994 = vmatprep.subr.mxu0 0.0
    %995 = vmatpush1.msra.mxu0 0.0
    %996 = vmatprep.subr.mxu0 0.0
    %997 = vmatpush1.msra.mxu0 0.0
    %998 = vmatprep.subr.mxu0 0.0
    %999 = vmatpush1.msra.mxu0 0.0
    %1000 = vmatprep.subr.mxu0 0.0
    %1001 = vmatpush1.msra.mxu0 0.0
    %1002 = vmatprep.subr.mxu0 0.0
    %1003 = vmatpush1.msra.mxu0 0.0
    %1004 = vmatprep.subr.mxu0 0.0
    %1005 = vmatpush1.msra.mxu0 0.0
    %1006 = vmatprep.subr.mxu0 0.0
    %1007 = vmatpush1.msra.mxu0 0.0
    %1008 = vmatprep.subr.mxu0 0.0
    %1009 = vmatpush1.msra.mxu0 0.0
    %1010 = vmatprep.subr.mxu0 0.0
    %1011 = vmatpush1.msra.mxu0 0.0
    %1012 = vmatprep.subr.mxu0 0.0
    %1013 = vmatpush1.msra.mxu0 0.0
    %1014 = vmatprep.subr.mxu0 0.0
    %1015 = vmatpush1.msra.mxu0 0.0
    %1016 = vmatprep.subr.mxu0 0.0
    %1017 = vmatpush1.msra.mxu0 0.0
    %1018 = vmatprep.subr.mxu0 0.0
    %1019 = vmatpush1.msra.mxu0 0.0
    %1020 = vmatprep.subr.mxu0 0.0
    %1021 = vmatpush1.msra.mxu0 0.0
    %1022 = vmatprep.subr.mxu0 0.0
    %1023 = vmatpush1.msra.mxu0 0.0
    %1024 = vmatprep.subr.mxu0 0.0
    %1025 = vmatpush1.msra.mxu0 0.0
    %1026 = vmatprep.subr.mxu0 0.0
    %1027 = vmatpush1.msra.mxu0 0.0
    %1028 = vmatprep.subr.mxu0 0.0
    %1029 = vmatpush1.msra.mxu0 0.0
    %1030 = vmatprep.subr.mxu0 0.0
    %1031 = vmatpush1.msra.mxu0 0.0
    %1032 = vmatprep.subr.mxu0 0.0
    %1033 = vmatpush1.msra.mxu0 0.0
    %1034 = vmatprep.subr.mxu0 0.0
    %1035 = vmatpush1.msra.mxu0 0.0
    %1036 = vmatprep.subr.mxu0 0.0
    %1037 = vmatpush1.msra.mxu0 0.0
    %1038 = vmatprep.subr.mxu0 0.0
    %1039 = vmatpush1.msra.mxu0 0.0
    %1040 = vmatprep.mubr.f32.mxu0 0.0
    %1041 = vmatmul.mubr.f32.gmra.mrb[0].mxu0 %v974
    %v1042 = vpop.f32.mrb[0].mxu0
    %v1043 = vadd.f32 0.0, %v1042
    %v1044 = vpop.f32.mrb[0].mxu0
    %1045 = vdwg.mxu0
    %1047 = vrot.lane.b32.xlu0 %v713, 8
    %v1048 = vpop.permute.xlu0 %1047
    %1051 = vrot.lane.b32.xlu0 %v878, 16
    %v1052 = vpop.permute.xlu0 %1051
    %1055 = vrot.lane.b32.xlu0 %v1043, 24
    %v1056 = vpop.permute.xlu0 %1055
    %v1058 = vsel %vm389, %v547, %v1048
    %vm1059 = vcmask 130048
    %v1060 = vsel %vm1059, %v1058, %v1052
    %vm1061 = vcmask 195584
    %v1062 = vsel %vm1061, %v1060, %v1056
    %v1064 = vsel %vm389, %v218, 0
    %v1067 = vsel %vm389, %v301, 0
    %1069 = vmatprep.subr.mxu0 0.0
    %1070 = vmatpush1.xpose.msra.mxu0 %v1067
    %1071 = vmatprep.subr.mxu0 0.0
    %1072 = vmatpush1.xpose.msra.mxu0 0.0
    %1073 = vmatprep.subr.mxu0 0.0
    %1074 = vmatpush1.xpose.msra.mxu0 0.0
    %1075 = vmatprep.subr.mxu0 0.0
    %1076 = vmatpush1.xpose.msra.mxu0 0.0
    %1077 = vmatprep.subr.mxu0 0.0
    %1078 = vmatpush1.xpose.msra.mxu0 0.0
    %1079 = vmatprep.subr.mxu0 0.0
    %1080 = vmatpush1.xpose.msra.mxu0 0.0
    %1081 = vmatprep.subr.mxu0 0.0
    %1082 = vmatpush1.xpose.msra.mxu0 0.0
    %1083 = vmatprep.subr.mxu0 0.0
    %1084 = vmatpush1.xpose.msra.mxu0 0.0
    %1085 = vmatprep.subr.mxu0 0.0
    %1086 = vmatpush1.xpose.msra.mxu0 0.0
    %1087 = vmatprep.subr.mxu0 0.0
    %1088 = vmatpush1.xpose.msra.mxu0 0.0
    %1089 = vmatprep.subr.mxu0 0.0
    %1090 = vmatpush1.xpose.msra.mxu0 0.0
    %1091 = vmatprep.subr.mxu0 0.0
    %1092 = vmatpush1.xpose.msra.mxu0 0.0
    %1093 = vmatprep.subr.mxu0 0.0
    %1094 = vmatpush1.xpose.msra.mxu0 0.0
    %1095 = vmatprep.subr.mxu0 0.0
    %1096 = vmatpush1.xpose.msra.mxu0 0.0
    %1097 = vmatprep.subr.mxu0 0.0
    %1098 = vmatpush1.xpose.msra.mxu0 0.0
    %1099 = vmatprep.subr.mxu0 0.0
    %1100 = vmatpush1.xpose.msra.mxu0 0.0
    %1101 = vmatprep.subr.mxu0 0.0
    %1102 = vmatpush1.xpose.msra.mxu0 0.0
    %1103 = vmatprep.subr.mxu0 0.0
    %1104 = vmatpush1.xpose.msra.mxu0 0.0
    %1105 = vmatprep.subr.mxu0 0.0
    %1106 = vmatpush1.xpose.msra.mxu0 0.0
    %1107 = vmatprep.subr.mxu0 0.0
    %1108 = vmatpush1.xpose.msra.mxu0 0.0
    %1109 = vmatprep.subr.mxu0 0.0
    %1110 = vmatpush1.xpose.msra.mxu0 0.0
    %1111 = vmatprep.subr.mxu0 0.0
    %1112 = vmatpush1.xpose.msra.mxu0 0.0
    %1113 = vmatprep.subr.mxu0 0.0
    %1114 = vmatpush1.xpose.msra.mxu0 0.0
    %1115 = vmatprep.subr.mxu0 0.0
    %1116 = vmatpush1.xpose.msra.mxu0 0.0
    %1117 = vmatprep.subr.mxu0 0.0
    %1118 = vmatpush1.xpose.msra.mxu0 0.0
    %1119 = vmatprep.subr.mxu0 0.0
    %1120 = vmatpush1.xpose.msra.mxu0 0.0
    %1121 = vmatprep.subr.mxu0 0.0
    %1122 = vmatpush1.xpose.msra.mxu0 0.0
    %1123 = vmatprep.subr.mxu0 0.0
    %1124 = vmatpush1.xpose.msra.mxu0 0.0
    %1125 = vmatprep.subr.mxu0 0.0
    %1126 = vmatpush1.xpose.msra.mxu0 0.0
    %1127 = vmatprep.subr.mxu0 0.0
    %1128 = vmatpush1.xpose.msra.mxu0 0.0
    %1129 = vmatprep.subr.mxu0 0.0
    %1130 = vmatpush1.xpose.msra.mxu0 0.0
    %1131 = vmatprep.subr.mxu0 0.0
    %1132 = vmatpush1.xpose.msra.mxu0 0.0
    %1133 = vmatprep.mubr.f32.mxu0 0.0
    %1134 = vmatmul.mubr.f32.gmra.mrb[0].mxu0 %v1064
    %v1135 = vpop.f32.mrb[0].mxu0
    %v1136 = vadd.f32 0.0, %v1135
    %v1137 = vpop.f32.mrb[0].mxu0
    %1138 = vdwg.mxu0
    %v1139 = vsel %vm389, %v1136, -inf
    %1140 = vmax.xlane.f32.xlu0 %v1139
    %v1141 = vpop.xlane.xlu0 %1140
    %v1142 = vsub.f32 %v1136, %v1141
    %v1143 = vmul.f32 %v1142, 1.442695
    %v1144 = vpow.pop %v1143
    %v1145 = vsel %vm389, %v1144, 0.0
    %1146 = vadd.xlane.f32.xlu0 %v1145
    %v1147 = vpop.xlane.xlu0 %1146
    %v1148 = vrcp.pop %v1147
    %v1149 = vmul.f32 %v1144, %v1148
    %v1151 = vsel %vm389, %v1149, 0
    %1153 = vmatprep.subr.mxu0 0.0
    %1154 = vmatpush1.msra.mxu0 %v386
    %1155 = vmatprep.subr.mxu0 0.0
    %1156 = vmatpush1.msra.mxu0 0.0
    %1157 = vmatprep.subr.mxu0 0.0
    %1158 = vmatpush1.msra.mxu0 0.0
    %1159 = vmatprep.subr.mxu0 0.0
    %1160 = vmatpush1.msra.mxu0 0.0
    %1161 = vmatprep.subr.mxu0 0.0
    %1162 = vmatpush1.msra.mxu0 0.0
    %1163 = vmatprep.subr.mxu0 0.0
    %1164 = vmatpush1.msra.mxu0 0.0
    %1165 = vmatprep.subr.mxu0 0.0
    %1166 = vmatpush1.msra.mxu0 0.0
    %1167 = vmatprep.subr.mxu0 0.0
    %1168 = vmatpush1.msra.mxu0 0.0
    %1169 = vmatprep.subr.mxu0 0.0
    %1170 = vmatpush1.msra.mxu0 0.0
    %1171 = vmatprep.subr.mxu0 0.0
    %1172 = vmatpush1.msra.mxu0 0.0
    %1173 = vmatprep.subr.mxu0 0.0
    %1174 = vmatpush1.msra.mxu0 0.0
    %1175 = vmatprep.subr.mxu0 0.0
    %1176 = vmatpush1.msra.mxu0 0.0
    %1177 = vmatprep.subr.mxu0 0.0
    %1178 = vmatpush1.msra.mxu0 0.0
    %1179 = vmatprep.subr.mxu0 0.0
    %1180 = vmatpush1.msra.mxu0 0.0
    %1181 = vmatprep.subr.mxu0 0.0
    %1182 = vmatpush1.msra.mxu0 0.0
    %1183 = vmatprep.subr.mxu0 0.0
    %1184 = vmatpush1.msra.mxu0 0.0
    %1185 = vmatprep.subr.mxu0 0.0
    %1186 = vmatpush1.msra.mxu0 0.0
    %1187 = vmatprep.subr.mxu0 0.0
    %1188 = vmatpush1.msra.mxu0 0.0
    %1189 = vmatprep.subr.mxu0 0.0
    %1190 = vmatpush1.msra.mxu0 0.0
    %1191 = vmatprep.subr.mxu0 0.0
    %1192 = vmatpush1.msra.mxu0 0.0
    %1193 = vmatprep.subr.mxu0 0.0
    %1194 = vmatpush1.msra.mxu0 0.0
    %1195 = vmatprep.subr.mxu0 0.0
    %1196 = vmatpush1.msra.mxu0 0.0
    %1197 = vmatprep.subr.mxu0 0.0
    %1198 = vmatpush1.msra.mxu0 0.0
    %1199 = vmatprep.subr.mxu0 0.0
    %1200 = vmatpush1.msra.mxu0 0.0
    %1201 = vmatprep.subr.mxu0 0.0
    %1202 = vmatpush1.msra.mxu0 0.0
    %1203 = vmatprep.subr.mxu0 0.0
    %1204 = vmatpush1.msra.mxu0 0.0
    %1205 = vmatprep.subr.mxu0 0.0
    %1206 = vmatpush1.msra.mxu0 0.0
    %1207 = vmatprep.subr.mxu0 0.0
    %1208 = vmatpush1.msra.mxu0 0.0
    %1209 = vmatprep.subr.mxu0 0.0
    %1210 = vmatpush1.msra.mxu0 0.0
    %1211 = vmatprep.subr.mxu0 0.0
    %1212 = vmatpush1.msra.mxu0 0.0
    %1213 = vmatprep.subr.mxu0 0.0
    %1214 = vmatpush1.msra.mxu0 0.0
    %1215 = vmatprep.subr.mxu0 0.0
    %1216 = vmatpush1.msra.mxu0 0.0
    %1217 = vmatprep.mubr.f32.mxu0 0.0
    %1218 = vmatmul.mubr.f32.gmra.mrb[0].mxu0 %v1151
    %v1219 = vpop.f32.mrb[0].mxu0
    %v1220 = vadd.f32 0.0, %v1219
    %v1221 = vpop.f32.mrb[0].mxu0
    %1222 = vdwg.mxu0
    %1223 = vrot.lane.b32.xlu0 %v218, 120
    %v1224 = vpop.permute.xlu0 %1223
    %1225 = vrot.lane.b32.xlu0 %v301, 120
    %v1226 = vpop.permute.xlu0 %1225
    %v1227 = vsel %vm389, %v1224, 0
    %v1229 = vsel %vm389, %v1226, 0
    %1231 = vmatprep.subr.mxu0 0.0
    %1232 = vmatpush1.xpose.msra.mxu0 %v1229
    %1233 = vmatprep.subr.mxu0 0.0
    %1234 = vmatpush1.xpose.msra.mxu0 0.0
    %1235 = vmatprep.subr.mxu0 0.0
    %1236 = vmatpush1.xpose.msra.mxu0 0.0
    %1237 = vmatprep.subr.mxu0 0.0
    %1238 = vmatpush1.xpose.msra.mxu0 0.0
    %1239 = vmatprep.subr.mxu0 0.0
    %1240 = vmatpush1.xpose.msra.mxu0 0.0
    %1241 = vmatprep.subr.mxu0 0.0
    %1242 = vmatpush1.xpose.msra.mxu0 0.0
    %1243 = vmatprep.subr.mxu0 0.0
    %1244 = vmatpush1.xpose.msra.mxu0 0.0
    %1245 = vmatprep.subr.mxu0 0.0
    %1246 = vmatpush1.xpose.msra.mxu0 0.0
    %1247 = vmatprep.subr.mxu0 0.0
    %1248 = vmatpush1.xpose.msra.mxu0 0.0
    %1249 = vmatprep.subr.mxu0 0.0
    %1250 = vmatpush1.xpose.msra.mxu0 0.0
    %1251 = vmatprep.subr.mxu0 0.0
    %1252 = vmatpush1.xpose.msra.mxu0 0.0
    %1253 = vmatprep.subr.mxu0 0.0
    %1254 = vmatpush1.xpose.msra.mxu0 0.0
    %1255 = vmatprep.subr.mxu0 0.0
    %1256 = vmatpush1.xpose.msra.mxu0 0.0
    %1257 = vmatprep.subr.mxu0 0.0
    %1258 = vmatpush1.xpose.msra.mxu0 0.0
    %1259 = vmatprep.subr.mxu0 0.0
    %1260 = vmatpush1.xpose.msra.mxu0 0.0
    %1261 = vmatprep.subr.mxu0 0.0
    %1262 = vmatpush1.xpose.msra.mxu0 0.0
    %1263 = vmatprep.subr.mxu0 0.0
    %1264 = vmatpush1.xpose.msra.mxu0 0.0
    %1265 = vmatprep.subr.mxu0 0.0
    %1266 = vmatpush1.xpose.msra.mxu0 0.0
    %1267 = vmatprep.subr.mxu0 0.0
    %1268 = vmatpush1.xpose.msra.mxu0 0.0
    %1269 = vmatprep.subr.mxu0 0.0
    %1270 = vmatpush1.xpose.msra.mxu0 0.0
    %1271 = vmatprep.subr.mxu0 0.0
    %1272 = vmatpush1.xpose.msra.mxu0 0.0
    %1273 = vmatprep.subr.mxu0 0.0
    %1274 = vmatpush1.xpose.msra.mxu0 0.0
    %1275 = vmatprep.subr.mxu0 0.0
    %1276 = vmatpush1.xpose.msra.mxu0 0.0
    %1277 = vmatprep.subr.mxu0 0.0
    %1278 = vmatpush1.xpose.msra.mxu0 0.0
    %1279 = vmatprep.subr.mxu0 0.0
    %1280 = vmatpush1.xpose.msra.mxu0 0.0
    %1281 = vmatprep.subr.mxu0 0.0
    %1282 = vmatpush1.xpose.msra.mxu0 0.0
    %1283 = vmatprep.subr.mxu0 0.0
    %1284 = vmatpush1.xpose.msra.mxu0 0.0
    %1285 = vmatprep.subr.mxu0 0.0
    %1286 = vmatpush1.xpose.msra.mxu0 0.0
    %1287 = vmatprep.subr.mxu0 0.0
    %1288 = vmatpush1.xpose.msra.mxu0 0.0
    %1289 = vmatprep.subr.mxu0 0.0
    %1290 = vmatpush1.xpose.msra.mxu0 0.0
    %1291 = vmatprep.subr.mxu0 0.0
    %1292 = vmatpush1.xpose.msra.mxu0 0.0
    %1293 = vmatprep.subr.mxu0 0.0
    %1294 = vmatpush1.xpose.msra.mxu0 0.0
    %1295 = vmatprep.mubr.f32.mxu0 0.0
    %1296 = vmatmul.mubr.f32.gmra.mrb[0].mxu0 %v1227
    %v1297 = vpop.f32.mrb[0].mxu0
    %v1298 = vadd.f32 0.0, %v1297
    %v1299 = vpop.f32.mrb[0].mxu0
    %1300 = vdwg.mxu0
    %v1301 = vsel %vm389, %v1298, -inf
    %1302 = vmax.xlane.f32.xlu0 %v1301
    %v1303 = vpop.xlane.xlu0 %1302
    %v1304 = vsub.f32 %v1298, %v1303
    %v1305 = vmul.f32 %v1304, 1.442695
    %v1306 = vpow.pop %v1305
    %v1307 = vsel %vm389, %v1306, 0.0
    %1308 = vadd.xlane.f32.xlu0 %v1307
    %v1309 = vpop.xlane.xlu0 %1308
    %v1310 = vrcp.pop %v1309
    %v1311 = vmul.f32 %v1306, %v1310
    %1313 = vrot.lane.b32.xlu0 %v386, 120
    %v1314 = vpop.permute.xlu0 %1313
    %v1317 = vsel %vm389, %v1311, 0
    %1319 = vmatprep.subr.mxu0 0.0
    %1320 = vmatpush1.msra.mxu0 %v1314
    %1321 = vmatprep.subr.mxu0 0.0
    %1322 = vmatpush1.msra.mxu0 0.0
    %1323 = vmatprep.subr.mxu0 0.0
    %1324 = vmatpush1.msra.mxu0 0.0
    %1325 = vmatprep.subr.mxu0 0.0
    %1326 = vmatpush1.msra.mxu0 0.0
    %1327 = vmatprep.subr.mxu0 0.0
    %1328 = vmatpush1.msra.mxu0 0.0
    %1329 = vmatprep.subr.mxu0 0.0
    %1330 = vmatpush1.msra.mxu0 0.0
    %1331 = vmatprep.subr.mxu0 0.0
    %1332 = vmatpush1.msra.mxu0 0.0
    %1333 = vmatprep.subr.mxu0 0.0
    %1334 = vmatpush1.msra.mxu0 0.0
    %1335 = vmatprep.subr.mxu0 0.0
    %1336 = vmatpush1.msra.mxu0 0.0
    %1337 = vmatprep.subr.mxu0 0.0
    %1338 = vmatpush1.msra.mxu0 0.0
    %1339 = vmatprep.subr.mxu0 0.0
    %1340 = vmatpush1.msra.mxu0 0.0
    %1341 = vmatprep.subr.mxu0 0.0
    %1342 = vmatpush1.msra.mxu0 0.0
    %1343 = vmatprep.subr.mxu0 0.0
    %1344 = vmatpush1.msra.mxu0 0.0
    %1345 = vmatprep.subr.mxu0 0.0
    %1346 = vmatpush1.msra.mxu0 0.0
    %1347 = vmatprep.subr.mxu0 0.0
    %1348 = vmatpush1.msra.mxu0 0.0
    %1349 = vmatprep.subr.mxu0 0.0
    %1350 = vmatpush1.msra.mxu0 0.0
    %1351 = vmatprep.subr.mxu0 0.0
    %1352 = vmatpush1.msra.mxu0 0.0
    %1353 = vmatprep.subr.mxu0 0.0
    %1354 = vmatpush1.msra.mxu0 0.0
    %1355 = vmatprep.subr.mxu0 0.0
    %1356 = vmatpush1.msra.mxu0 0.0
    %1357 = vmatprep.subr.mxu0 0.0
    %1358 = vmatpush1.msra.mxu0 0.0
    %1359 = vmatprep.subr.mxu0 0.0
    %1360 = vmatpush1.msra.mxu0 0.0
    %1361 = vmatprep.subr.mxu0 0.0
    %1362 = vmatpush1.msra.mxu0 0.0
    %1363 = vmatprep.subr.mxu0 0.0
    %1364 = vmatpush1.msra.mxu0 0.0
    %1365 = vmatprep.subr.mxu0 0.0
    %1366 = vmatpush1.msra.mxu0 0.0
    %1367 = vmatprep.subr.mxu0 0.0
    %1368 = vmatpush1.msra.mxu0 0.0
    %1369 = vmatprep.subr.mxu0 0.0
    %1370 = vmatpush1.msra.mxu0 0.0
    %1371 = vmatprep.subr.mxu0 0.0
    %1372 = vmatpush1.msra.mxu0 0.0
    %1373 = vmatprep.subr.mxu0 0.0
    %1374 = vmatpush1.msra.mxu0 0.0
    %1375 = vmatprep.subr.mxu0 0.0
    %1376 = vmatpush1.msra.mxu0 0.0
    %1377 = vmatprep.subr.mxu0 0.0
    %1378 = vmatpush1.msra.mxu0 0.0
    %1379 = vmatprep.subr.mxu0 0.0
    %1380 = vmatpush1.msra.mxu0 0.0
    %1381 = vmatprep.subr.mxu0 0.0
    %1382 = vmatpush1.msra.mxu0 0.0
    %1383 = vmatprep.mubr.f32.mxu0 0.0
    %1384 = vmatmul.mubr.f32.gmra.mrb[0].mxu0 %v1317
    %v1385 = vpop.f32.mrb[0].mxu0
    %v1386 = vadd.f32 0.0, %v1385
    %v1387 = vpop.f32.mrb[0].mxu0
    %1388 = vdwg.mxu0
    %1389 = vrot.lane.b32.xlu0 %v218, 112
    %v1390 = vpop.permute.xlu0 %1389
    %1391 = vrot.lane.b32.xlu0 %v301, 112
    %v1392 = vpop.permute.xlu0 %1391
    %v1393 = vsel %vm389, %v1390, 0
    %v1395 = vsel %vm389, %v1392, 0
    %1397 = vmatprep.subr.mxu0 0.0
    %1398 = vmatpush1.xpose.msra.mxu0 %v1395
    %1399 = vmatprep.subr.mxu0 0.0
    %1400 = vmatpush1.xpose.msra.mxu0 0.0
    %1401 = vmatprep.subr.mxu0 0.0
    %1402 = vmatpush1.xpose.msra.mxu0 0.0
    %1403 = vmatprep.subr.mxu0 0.0
    %1404 = vmatpush1.xpose.msra.mxu0 0.0
    %1405 = vmatprep.subr.mxu0 0.0
    %1406 = vmatpush1.xpose.msra.mxu0 0.0
    %1407 = vmatprep.subr.mxu0 0.0
    %1408 = vmatpush1.xpose.msra.mxu0 0.0
    %1409 = vmatprep.subr.mxu0 0.0
    %1410 = vmatpush1.xpose.msra.mxu0 0.0
    %1411 = vmatprep.subr.mxu0 0.0
    %1412 = vmatpush1.xpose.msra.mxu0 0.0
    %1413 = vmatprep.subr.mxu0 0.0
    %1414 = vmatpush1.xpose.msra.mxu0 0.0
    %1415 = vmatprep.subr.mxu0 0.0
    %1416 = vmatpush1.xpose.msra.mxu0 0.0
    %1417 = vmatprep.subr.mxu0 0.0
    %1418 = vmatpush1.xpose.msra.mxu0 0.0
    %1419 = vmatprep.subr.mxu0 0.0
    %1420 = vmatpush1.xpose.msra.mxu0 0.0
    %1421 = vmatprep.subr.mxu0 0.0
    %1422 = vmatpush1.xpose.msra.mxu0 0.0
    %1423 = vmatprep.subr.mxu0 0.0
    %1424 = vmatpush1.xpose.msra.mxu0 0.0
    %1425 = vmatprep.subr.mxu0 0.0
    %1426 = vmatpush1.xpose.msra.mxu0 0.0
    %1427 = vmatprep.subr.mxu0 0.0
    %1428 = vmatpush1.xpose.msra.mxu0 0.0
    %1429 = vmatprep.subr.mxu0 0.0
    %1430 = vmatpush1.xpose.msra.mxu0 0.0
    %1431 = vmatprep.subr.mxu0 0.0
    %1432 = vmatpush1.xpose.msra.mxu0 0.0
    %1433 = vmatprep.subr.mxu0 0.0
    %1434 = vmatpush1.xpose.msra.mxu0 0.0
    %1435 = vmatprep.subr.mxu0 0.0
    %1436 = vmatpush1.xpose.msra.mxu0 0.0
    %1437 = vmatprep.subr.mxu0 0.0
    %1438 = vmatpush1.xpose.msra.mxu0 0.0
    %1439 = vmatprep.subr.mxu0 0.0
    %1440 = vmatpush1.xpose.msra.mxu0 0.0
    %1441 = vmatprep.subr.mxu0 0.0
    %1442 = vmatpush1.xpose.msra.mxu0 0.0
    %1443 = vmatprep.subr.mxu0 0.0
    %1444 = vmatpush1.xpose.msra.mxu0 0.0
    %1445 = vmatprep.subr.mxu0 0.0
    %1446 = vmatpush1.xpose.msra.mxu0 0.0
    %1447 = vmatprep.subr.mxu0 0.0
    %1448 = vmatpush1.xpose.msra.mxu0 0.0
    %1449 = vmatprep.subr.mxu0 0.0
    %1450 = vmatpush1.xpose.msra.mxu0 0.0
    %1451 = vmatprep.subr.mxu0 0.0
    %1452 = vmatpush1.xpose.msra.mxu0 0.0
    %1453 = vmatprep.subr.mxu0 0.0
    %1454 = vmatpush1.xpose.msra.mxu0 0.0
    %1455 = vmatprep.subr.mxu0 0.0
    %1456 = vmatpush1.xpose.msra.mxu0 0.0
    %1457 = vmatprep.subr.mxu0 0.0
    %1458 = vmatpush1.xpose.msra.mxu0 0.0
    %1459 = vmatprep.subr.mxu0 0.0
    %1460 = vmatpush1.xpose.msra.mxu0 0.0
    %1461 = vmatprep.mubr.f32.mxu0 0.0
    %1462 = vmatmul.mubr.f32.gmra.mrb[0].mxu0 %v1393
    %v1463 = vpop.f32.mrb[0].mxu0
    %v1464 = vadd.f32 0.0, %v1463
    %v1465 = vpop.f32.mrb[0].mxu0
    %1466 = vdwg.mxu0
    %v1467 = vsel %vm389, %v1464, -inf
    %1468 = vmax.xlane.f32.xlu0 %v1467
    %v1469 = vpop.xlane.xlu0 %1468
    %v1470 = vsub.f32 %v1464, %v1469
    %v1471 = vmul.f32 %v1470, 1.442695
    %v1472 = vpow.pop %v1471
    %v1473 = vsel %vm389, %v1472, 0.0
    %1474 = vadd.xlane.f32.xlu0 %v1473
    %v1475 = vpop.xlane.xlu0 %1474
    %v1476 = vrcp.pop %v1475
    %v1477 = vmul.f32 %v1472, %v1476
    %1478 = vrot.lane.b32.xlu0 %v386, 112
    %v1479 = vpop.permute.xlu0 %1478
    %v1482 = vsel %vm389, %v1477, 0
    %1484 = vmatprep.subr.mxu0 0.0
    %1485 = vmatpush1.msra.mxu0 %v1479
    %1486 = vmatprep.subr.mxu0 0.0
    %1487 = vmatpush1.msra.mxu0 0.0
    %1488 = vmatprep.subr.mxu0 0.0
    %1489 = vmatpush1.msra.mxu0 0.0
    %1490 = vmatprep.subr.mxu0 0.0
    %1491 = vmatpush1.msra.mxu0 0.0
    %1492 = vmatprep.subr.mxu0 0.0
    %1493 = vmatpush1.msra.mxu0 0.0
    %1494 = vmatprep.subr.mxu0 0.0
    %1495 = vmatpush1.msra.mxu0 0.0
    %1496 = vmatprep.subr.mxu0 0.0
    %1497 = vmatpush1.msra.mxu0 0.0
    %1498 = vmatprep.subr.mxu0 0.0
    %1499 = vmatpush1.msra.mxu0 0.0
    %1500 = vmatprep.subr.mxu0 0.0
    %1501 = vmatpush1.msra.mxu0 0.0
    %1502 = vmatprep.subr.mxu0 0.0
    %1503 = vmatpush1.msra.mxu0 0.0
    %1504 = vmatprep.subr.mxu0 0.0
    %1505 = vmatpush1.msra.mxu0 0.0
    %1506 = vmatprep.subr.mxu0 0.0
    %1507 = vmatpush1.msra.mxu0 0.0
    %1508 = vmatprep.subr.mxu0 0.0
    %1509 = vmatpush1.msra.mxu0 0.0
    %1510 = vmatprep.subr.mxu0 0.0
    %1511 = vmatpush1.msra.mxu0 0.0
    %1512 = vmatprep.subr.mxu0 0.0
    %1513 = vmatpush1.msra.mxu0 0.0
    %1514 = vmatprep.subr.mxu0 0.0
    %1515 = vmatpush1.msra.mxu0 0.0
    %1516 = vmatprep.subr.mxu0 0.0
    %1517 = vmatpush1.msra.mxu0 0.0
    %1518 = vmatprep.subr.mxu0 0.0
    %1519 = vmatpush1.msra.mxu0 0.0
    %1520 = vmatprep.subr.mxu0 0.0
    %1521 = vmatpush1.msra.mxu0 0.0
    %1522 = vmatprep.subr.mxu0 0.0
    %1523 = vmatpush1.msra.mxu0 0.0
    %1524 = vmatprep.subr.mxu0 0.0
    %1525 = vmatpush1.msra.mxu0 0.0
    %1526 = vmatprep.subr.mxu0 0.0
    %1527 = vmatpush1.msra.mxu0 0.0
    %1528 = vmatprep.subr.mxu0 0.0
    %1529 = vmatpush1.msra.mxu0 0.0
    %1530 = vmatprep.subr.mxu0 0.0
    %1531 = vmatpush1.msra.mxu0 0.0
    %1532 = vmatprep.subr.mxu0 0.0
    %1533 = vmatpush1.msra.mxu0 0.0
    %1534 = vmatprep.subr.mxu0 0.0
    %1535 = vmatpush1.msra.mxu0 0.0
    %1536 = vmatprep.subr.mxu0 0.0
    %1537 = vmatpush1.msra.mxu0 0.0
    %1538 = vmatprep.subr.mxu0 0.0
    %1539 = vmatpush1.msra.mxu0 0.0
    %1540 = vmatprep.subr.mxu0 0.0
    %1541 = vmatpush1.msra.mxu0 0.0
    %1542 = vmatprep.subr.mxu0 0.0
    %1543 = vmatpush1.msra.mxu0 0.0
    %1544 = vmatprep.subr.mxu0 0.0
    %1545 = vmatpush1.msra.mxu0 0.0
    %1546 = vmatprep.subr.mxu0 0.0
    %1547 = vmatpush1.msra.mxu0 0.0
    %1548 = vmatprep.mubr.f32.mxu0 0.0
    %1549 = vmatmul.mubr.f32.gmra.mrb[0].mxu0 %v1482
    %v1550 = vpop.f32.mrb[0].mxu0
    %v1551 = vadd.f32 0.0, %v1550
    %v1552 = vpop.f32.mrb[0].mxu0
    %1553 = vdwg.mxu0
    %1554 = vrot.lane.b32.xlu0 %v218, 104
    %v1555 = vpop.permute.xlu0 %1554
    %1556 = vrot.lane.b32.xlu0 %v301, 104
    %v1557 = vpop.permute.xlu0 %1556
    %v1558 = vsel %vm389, %v1555, 0
    %v1560 = vsel %vm389, %v1557, 0
    %1562 = vmatprep.subr.mxu0 0.0
    %1563 = vmatpush1.xpose.msra.mxu0 %v1560
    %1564 = vmatprep.subr.mxu0 0.0
    %1565 = vmatpush1.xpose.msra.mxu0 0.0
    %1566 = vmatprep.subr.mxu0 0.0
    %1567 = vmatpush1.xpose.msra.mxu0 0.0
    %1568 = vmatprep.subr.mxu0 0.0
    %1569 = vmatpush1.xpose.msra.mxu0 0.0
    %1570 = vmatprep.subr.mxu0 0.0
    %1571 = vmatpush1.xpose.msra.mxu0 0.0
    %1572 = vmatprep.subr.mxu0 0.0
    %1573 = vmatpush1.xpose.msra.mxu0 0.0
    %1574 = vmatprep.subr.mxu0 0.0
    %1575 = vmatpush1.xpose.msra.mxu0 0.0
    %1576 = vmatprep.subr.mxu0 0.0
    %1577 = vmatpush1.xpose.msra.mxu0 0.0
    %1578 = vmatprep.subr.mxu0 0.0
    %1579 = vmatpush1.xpose.msra.mxu0 0.0
    %1580 = vmatprep.subr.mxu0 0.0
    %1581 = vmatpush1.xpose.msra.mxu0 0.0
    %1582 = vmatprep.subr.mxu0 0.0
    %1583 = vmatpush1.xpose.msra.mxu0 0.0
    %1584 = vmatprep.subr.mxu0 0.0
    %1585 = vmatpush1.xpose.msra.mxu0 0.0
    %1586 = vmatprep.subr.mxu0 0.0
    %1587 = vmatpush1.xpose.msra.mxu0 0.0
    %1588 = vmatprep.subr.mxu0 0.0
    %1589 = vmatpush1.xpose.msra.mxu0 0.0
    %1590 = vmatprep.subr.mxu0 0.0
    %1591 = vmatpush1.xpose.msra.mxu0 0.0
    %1592 = vmatprep.subr.mxu0 0.0
    %1593 = vmatpush1.xpose.msra.mxu0 0.0
    %1594 = vmatprep.subr.mxu0 0.0
    %1595 = vmatpush1.xpose.msra.mxu0 0.0
    %1596 = vmatprep.subr.mxu0 0.0
    %1597 = vmatpush1.xpose.msra.mxu0 0.0
    %1598 = vmatprep.subr.mxu0 0.0
    %1599 = vmatpush1.xpose.msra.mxu0 0.0
    %1600 = vmatprep.subr.mxu0 0.0
    %1601 = vmatpush1.xpose.msra.mxu0 0.0
    %1602 = vmatprep.subr.mxu0 0.0
    %1603 = vmatpush1.xpose.msra.mxu0 0.0
    %1604 = vmatprep.subr.mxu0 0.0
    %1605 = vmatpush1.xpose.msra.mxu0 0.0
    %1606 = vmatprep.subr.mxu0 0.0
    %1607 = vmatpush1.xpose.msra.mxu0 0.0
    %1608 = vmatprep.subr.mxu0 0.0
    %1609 = vmatpush1.xpose.msra.mxu0 0.0
    %1610 = vmatprep.subr.mxu0 0.0
    %1611 = vmatpush1.xpose.msra.mxu0 0.0
    %1612 = vmatprep.subr.mxu0 0.0
    %1613 = vmatpush1.xpose.msra.mxu0 0.0
    %1614 = vmatprep.subr.mxu0 0.0
    %1615 = vmatpush1.xpose.msra.mxu0 0.0
    %1616 = vmatprep.subr.mxu0 0.0
    %1617 = vmatpush1.xpose.msra.mxu0 0.0
    %1618 = vmatprep.subr.mxu0 0.0
    %1619 = vmatpush1.xpose.msra.mxu0 0.0
    %1620 = vmatprep.subr.mxu0 0.0
    %1621 = vmatpush1.xpose.msra.mxu0 0.0
    %1622 = vmatprep.subr.mxu0 0.0
    %1623 = vmatpush1.xpose.msra.mxu0 0.0
    %1624 = vmatprep.subr.mxu0 0.0
    %1625 = vmatpush1.xpose.msra.mxu0 0.0
    %1626 = vmatprep.mubr.f32.mxu0 0.0
    %1627 = vmatmul.mubr.f32.gmra.mrb[0].mxu0 %v1558
    %v1628 = vpop.f32.mrb[0].mxu0
    %v1629 = vadd.f32 0.0, %v1628
    %v1630 = vpop.f32.mrb[0].mxu0
    %1631 = vdwg.mxu0
    %v1632 = vsel %vm389, %v1629, -inf
    %1633 = vmax.xlane.f32.xlu0 %v1632
    %v1634 = vpop.xlane.xlu0 %1633
    %v1635 = vsub.f32 %v1629, %v1634
    %v1636 = vmul.f32 %v1635, 1.442695
    %v1637 = vpow.pop %v1636
    %v1638 = vsel %vm389, %v1637, 0.0
    %1639 = vadd.xlane.f32.xlu0 %v1638
    %v1640 = vpop.xlane.xlu0 %1639
    %v1641 = vrcp.pop %v1640
    %v1642 = vmul.f32 %v1637, %v1641
    %1643 = vrot.lane.b32.xlu0 %v386, 104
    %v1644 = vpop.permute.xlu0 %1643
    %v1647 = vsel %vm389, %v1642, 0
    %1649 = vmatprep.subr.mxu0 0.0
    %1650 = vmatpush1.msra.mxu0 %v1644
    %1651 = vmatprep.subr.mxu0 0.0
    %1652 = vmatpush1.msra.mxu0 0.0
    %1653 = vmatprep.subr.mxu0 0.0
    %1654 = vmatpush1.msra.mxu0 0.0
    %1655 = vmatprep.subr.mxu0 0.0
    %1656 = vmatpush1.msra.mxu0 0.0
    %1657 = vmatprep.subr.mxu0 0.0
    %1658 = vmatpush1.msra.mxu0 0.0
    %1659 = vmatprep.subr.mxu0 0.0
    %1660 = vmatpush1.msra.mxu0 0.0
    %1661 = vmatprep.subr.mxu0 0.0
    %1662 = vmatpush1.msra.mxu0 0.0
    %1663 = vmatprep.subr.mxu0 0.0
    %1664 = vmatpush1.msra.mxu0 0.0
    %1665 = vmatprep.subr.mxu0 0.0
    %1666 = vmatpush1.msra.mxu0 0.0
    %1667 = vmatprep.subr.mxu0 0.0
    %1668 = vmatpush1.msra.mxu0 0.0
    %1669 = vmatprep.subr.mxu0 0.0
    %1670 = vmatpush1.msra.mxu0 0.0
    %1671 = vmatprep.subr.mxu0 0.0
    %1672 = vmatpush1.msra.mxu0 0.0
    %1673 = vmatprep.subr.mxu0 0.0
    %1674 = vmatpush1.msra.mxu0 0.0
    %1675 = vmatprep.subr.mxu0 0.0
    %1676 = vmatpush1.msra.mxu0 0.0
    %1677 = vmatprep.subr.mxu0 0.0
    %1678 = vmatpush1.msra.mxu0 0.0
    %1679 = vmatprep.subr.mxu0 0.0
    %1680 = vmatpush1.msra.mxu0 0.0
    %1681 = vmatprep.subr.mxu0 0.0
    %1682 = vmatpush1.msra.mxu0 0.0
    %1683 = vmatprep.subr.mxu0 0.0
    %1684 = vmatpush1.msra.mxu0 0.0
    %1685 = vmatprep.subr.mxu0 0.0
    %1686 = vmatpush1.msra.mxu0 0.0
    %1687 = vmatprep.subr.mxu0 0.0
    %1688 = vmatpush1.msra.mxu0 0.0
    %1689 = vmatprep.subr.mxu0 0.0
    %1690 = vmatpush1.msra.mxu0 0.0
    %1691 = vmatprep.subr.mxu0 0.0
    %1692 = vmatpush1.msra.mxu0 0.0
    %1693 = vmatprep.subr.mxu0 0.0
    %1694 = vmatpush1.msra.mxu0 0.0
    %1695 = vmatprep.subr.mxu0 0.0
    %1696 = vmatpush1.msra.mxu0 0.0
    %1697 = vmatprep.subr.mxu0 0.0
    %1698 = vmatpush1.msra.mxu0 0.0
    %1699 = vmatprep.subr.mxu0 0.0
    %1700 = vmatpush1.msra.mxu0 0.0
    %1701 = vmatprep.subr.mxu0 0.0
    %1702 = vmatpush1.msra.mxu0 0.0
    %1703 = vmatprep.subr.mxu0 0.0
    %1704 = vmatpush1.msra.mxu0 0.0
    %1705 = vmatprep.subr.mxu0 0.0
    %1706 = vmatpush1.msra.mxu0 0.0
    %1707 = vmatprep.subr.mxu0 0.0
    %1708 = vmatpush1.msra.mxu0 0.0
    %1709 = vmatprep.subr.mxu0 0.0
    %1710 = vmatpush1.msra.mxu0 0.0
    %1711 = vmatprep.subr.mxu0 0.0
    %1712 = vmatpush1.msra.mxu0 0.0
    %1713 = vmatprep.mubr.f32.mxu0 0.0
    %1714 = vmatmul.mubr.f32.gmra.mrb[0].mxu0 %v1647
    %v1715 = vpop.f32.mrb[0].mxu0
    %v1716 = vadd.f32 0.0, %v1715
    %v1717 = vpop.f32.mrb[0].mxu0
    %1718 = vdwg.mxu0
    %1720 = vrot.lane.b32.xlu0 %v1386, 8
    %v1721 = vpop.permute.xlu0 %1720
    %1724 = vrot.lane.b32.xlu0 %v1551, 16
    %v1725 = vpop.permute.xlu0 %1724
    %1728 = vrot.lane.b32.xlu0 %v1716, 24
    %v1729 = vpop.permute.xlu0 %1728
    %v1731 = vsel %vm389, %v1220, %v1721
    %v1732 = vsel %vm1059, %v1731, %v1725
    %v1733 = vsel %vm1061, %v1732, %v1729
    %v1734 = vld [vmem:[#allocation13] sm:$0xff]
    %v1735 = vld [vmem:[#allocation13 + $0x8] sm:$0xff]
    %v1736 = vld [vmem:[#allocation13 + $0x10] sm:$0xff]
    %v1737 = vld [vmem:[#allocation13 + $0x18] sm:$0xff]
    %v1738 = vld [vmem:[%s7] sm:$0x1]
    %v1740 = vlaneseq
    %v1741 = vshrl.u32 %v1740, 7
    %v1742 = vsub.s32 0, %v1741
    %v1743 = vrot.slane %v1738, %v1742
    %v1746 = vsel %vm135, %v1062, 0
    %v1749 = vsel %vm135, %v1733, 0
    %1751 = vmatprep.subr.mxu0 0.0
    %1752 = vmatpush1.msra.mxu0 %v1734
    %1753 = vmatprep.subr.mxu0 0.0
    %1754 = vmatpush1.msra.mxu0 %v1735
    %1755 = vmatprep.subr.mxu0 0.0
    %1756 = vmatpush1.msra.mxu0 %v1736
    %1757 = vmatprep.subr.mxu0 0.0
    %1758 = vmatpush1.msra.mxu0 %v1737
    %1759 = vmatprep.subr.mxu0 0.0
    %1760 = vmatpush1.msra.mxu0 0.0
    %1761 = vmatprep.subr.mxu0 0.0
    %1762 = vmatpush1.msra.mxu0 0.0
    %1763 = vmatprep.subr.mxu0 0.0
    %1764 = vmatpush1.msra.mxu0 0.0
    %1765 = vmatprep.subr.mxu0 0.0
    %1766 = vmatpush1.msra.mxu0 0.0
    %1767 = vmatprep.subr.mxu0 0.0
    %1768 = vmatpush1.msra.mxu0 0.0
    %1769 = vmatprep.subr.mxu0 0.0
    %1770 = vmatpush1.msra.mxu0 0.0
    %1771 = vmatprep.subr.mxu0 0.0
    %1772 = vmatpush1.msra.mxu0 0.0
    %1773 = vmatprep.subr.mxu0 0.0
    %1774 = vmatpush1.msra.mxu0 0.0
    %1775 = vmatprep.subr.mxu0 0.0
    %1776 = vmatpush1.msra.mxu0 0.0
    %1777 = vmatprep.subr.mxu0 0.0
    %1778 = vmatpush1.msra.mxu0 0.0
    %1779 = vmatprep.subr.mxu0 0.0
    %1780 = vmatpush1.msra.mxu0 0.0
    %1781 = vmatprep.subr.mxu0 0.0
    %1782 = vmatpush1.msra.mxu0 0.0
    %1783 = vmatprep.subr.mxu0 0.0
    %1784 = vmatpush1.msra.mxu0 0.0
    %1785 = vmatprep.subr.mxu0 0.0
    %1786 = vmatpush1.msra.mxu0 0.0
    %1787 = vmatprep.subr.mxu0 0.0
    %1788 = vmatpush1.msra.mxu0 0.0
    %1789 = vmatprep.subr.mxu0 0.0
    %1790 = vmatpush1.msra.mxu0 0.0
    %1791 = vmatprep.subr.mxu0 0.0
    %1792 = vmatpush1.msra.mxu0 0.0
    %1793 = vmatprep.subr.mxu0 0.0
    %1794 = vmatpush1.msra.mxu0 0.0
    %1795 = vmatprep.subr.mxu0 0.0
    %1796 = vmatpush1.msra.mxu0 0.0
    %1797 = vmatprep.subr.mxu0 0.0
    %1798 = vmatpush1.msra.mxu0 0.0
    %1799 = vmatprep.subr.mxu0 0.0
    %1800 = vmatpush1.msra.mxu0 0.0
    %1801 = vmatprep.subr.mxu0 0.0
    %1802 = vmatpush1.msra.mxu0 0.0
    %1803 = vmatprep.subr.mxu0 0.0
    %1804 = vmatpush1.msra.mxu0 0.0
    %1805 = vmatprep.subr.mxu0 0.0
    %1806 = vmatpush1.msra.mxu0 0.0
    %1807 = vmatprep.subr.mxu0 0.0
    %1808 = vmatpush1.msra.mxu0 0.0
    %1809 = vmatprep.subr.mxu0 0.0
    %1810 = vmatpush1.msra.mxu0 0.0
    %1811 = vmatprep.subr.mxu0 0.0
    %1812 = vmatpush1.msra.mxu0 0.0
    %1813 = vmatprep.subr.mxu0 0.0
    %1814 = vmatpush1.msra.mxu0 0.0
    %1815 = vmatprep.mubr.f32.mxu0 0.0
    %1816 = vmatmul.mubr.f32.gmra.mrb[0].mxu0 %v1746
    %v1817 = vpop.f32.mrb[0].mxu0
    %v1818 = vadd.f32 %v1743, %v1817
    %v1819 = vpop.f32.mrb[0].mxu0
    %1820 = vmatprep.mubr.f32.mxu0 0.0
    %1821 = vmatmul.mubr.f32.gmra.mrb[0].mxu0 %v1749
    %v1822 = vpop.f32.mrb[0].mxu0
    %v1823 = vadd.f32 %v1743, %v1822
    %v1824 = vpop.f32.mrb[0].mxu0
    %1825 = vdwg.mxu0
    %1826 = vst.msk [vmem:[#allocation14] sm:$0xff] %vm135, %v1818
    %1827 = vst.msk [vmem:[#allocation14 + $0x8] sm:$0xff] %vm135, %v1823
    // Predicated region
    $region62: #{tpu_custom_call.1} parent=1 // pred_check
      _
    $region63: #{tpu_custom_call.1} parent=1 // pred_check_branch
      %1829 = sbr.rel (0) target = $region65
    $region64: #{tpu_custom_call.1} parent=1 // pred_region
      %s1831 = ssub.s32 256, 256
      %1832 = vsyncadd [#allocation4], %s1831
      %s1833 = sshll.u32 [#allocation14], 4
      %s1834 = int_to_ptr.vmem [resolvable:$true] %s1833
      %1839 = dma.vmem_to_hbm [thread:$0]  %s1834, 256, %s8, [#allocation4], 128, 128, 8
    $region65: #{tpu_custom_call.1} parent=1 // pred_fallthru
      _
    // Predicated region
    $region66: #{tpu_custom_call.1} parent=1 // pred_check
      _
    $region67: #{tpu_custom_call.1} parent=1 // pred_check_branch
      %1841 = sbr.rel (0) target = $region69
    $region68: #{tpu_custom_call.1} parent=1 // pred_region
      %1842 = dma.done [#allocation4], 256
    $region69: #{tpu_custom_call.1} parent=1 // pred_fallthru
      _
    %1843 = vsyncpa [#allocation3], 1
    %1844 = vsyncpa [#allocation6], 1
    %1845 = vsyncpa [#allocation9], 1
    %1846 = vsyncpa [#allocation12], 1
    %1847 = vsyncpa [#allocation4], 1

</llo_original>
